<compile_context>
chip_gen: v7x
topology: tpu7x:2x2x1
jax: 0.10.0
libtpu: 0.0.40
codegen_flags: <defaults>
</compile_context>

<pallas_src>
import functools

import jax
import jax.numpy as jnp
from jax.experimental import pallas as pl
from jax.experimental.pallas import tpu as pltpu


def _adn(x):
    # TODO(synk): ADN module definition is not provided in the reference;
    # approximated here as LeakyReLU(0.2) (activation-only).
    return jnp.where(x > 0, x, 0.2 * x)


# ----------------------------- Pallas kernel ------------------------------ #

_TAP_OFFSETS = tuple((oy, ox) for oy in (-1, 0, 1) for ox in (-1, 0, 1))


def _conv3x3_flat(x, w_k, bias, masks, width, hw):
    """'same' 3x3 conv, stride 1, in flat lane-dense layout.

    x:     (Cin, H*W)    activations, H*W on the lane axis
    w_k:   (Cout, 9*Cin) weights, K ordered tap-major / channel-minor
    bias:  (Cout, 1) or None
    masks: (8, H*W)      edge-validity masks for the 8 non-center taps

    The 9 shifted views are produced with pltpu.roll (XLU slot) + a mask
    multiply (VPU) and stacked on the contraction axis, so the whole conv is
    one MXU matmul with K = 9*Cin and a lane-dense (Cout, H*W) output.
    """
    taps = []
    mi = 0
    for oy, ox in _TAP_OFFSETS:
        if oy == 0 and ox == 0:
            taps.append(x)                       # center tap: always in-bounds
            continue
        d = oy * width + ox
        shifted = pltpu.roll(x, shift=(-d) % hw, axis=1)
        taps.append(shifted * masks[mi:mi + 1, :])
        mi += 1
    patches = jnp.concatenate(taps, axis=0)      # (9*Cin, H*W)
    out = jnp.dot(w_k, patches, preferred_element_type=jnp.float32)
    if bias is not None:
        out = out + bias
    return out


def _mru_kernel(inp_ref, ht_ref, masks_ref,
                w_rg_h_ref, w_in_ref, b_in_ref,
                w_h1_ref, b_h1_ref,
                w_h2_ref, b_h2_ref,
                w_pr_ref, b_pr_ref,
                out_ref, *, width, ch, use_proj, batch_tile):
    hw = out_ref.shape[-1]
    masks = masks_ref[...]
    # Hoist weight / bias loads out of the (statically unrolled) batch loop.
    w_rg_h = w_rg_h_ref[...]
    w_in, b_in = w_in_ref[...], b_in_ref[...]
    w_h1, b_h1 = w_h1_ref[...], b_h1_ref[...]
    w_h2, b_h2 = w_h2_ref[...], b_h2_ref[...]

    for b in range(batch_tile):                  # packed images per grid step
        inp = inp_ref[b].astype(jnp.float32)     # (Ci, H*W)
        ht = ht_ref[b].astype(jnp.float32)       # (Ch, H*W)

        # full_inp = concat(adn(ht), inp) on channels; the conv over the concat
        # is computed as two partial convs (identical math).  The `inp` partial
        # conv is fused with the img_new conv: shared im2col, one matmul with
        # Cout = 2*Ch, biases pre-concatenated in the wrapper.
        rg_h = _conv3x3_flat(_adn(ht), w_rg_h, None, masks, width, hw)
        both = _conv3x3_flat(inp, w_in, b_in, masks, width, hw)  # (2*Ch, H*W)
        rg = _adn(rg_h + both[:ch])
        img_new = both[ch:]

        # per-(image, channel) min-max normalization over H, W (lane reduce)
        rg_min = jnp.min(rg, axis=1, keepdims=True)
        rg_max = jnp.max(rg, axis=1, keepdims=True)
        # eps guards constant channels (div-by-zero); reciprocal on the EUP.
        inv = pl.reciprocal(rg_max - rg_min + 1e-6, approx=True)
        rg = (rg - rg_min) * inv

        ht_plus = ht + rg * img_new
        h_new = _adn(_conv3x3_flat(_adn(ht_plus), w_h1, b_h1, masks, width, hw))
        h_new = _conv3x3_flat(h_new, w_h2, b_h2, masks, width, hw)

        if use_proj:   # hidden_depth != filter_depth -> 1x1 'same' conv on ht
            ht_res = (jnp.dot(w_pr_ref[...], ht,
                              preferred_element_type=jnp.float32)
                      + b_pr_ref[...])
        else:
            ht_res = ht

        out_ref[b] = (ht_res + h_new).astype(out_ref.dtype)


# ------------------------------ wrapper ----------------------------------- #

def _w_flat(w_hwio):
    """HWIO (kh, kw, Cin, Cout) -> (Cout, kh*kw*Cin), tap-major/channel-minor."""
    kh, kw, cin, cout = w_hwio.shape
    return jnp.transpose(w_hwio, (3, 0, 1, 2)).reshape(cout, kh * kw * cin)


def _tap_masks(h, w):
    """Edge-validity masks (8, H*W) for the 8 non-center 3x3 taps."""
    p = jnp.arange(h * w, dtype=jnp.int32)
    y, x = p // w, p % w
    rows = []
    for oy, ox in _TAP_OFFSETS:
        if oy == 0 and ox == 0:
            continue
        ok = (y + oy >= 0) & (y + oy < h) & (x + ox >= 0) & (x + ox < w)
        rows.append(ok.astype(jnp.float32))
    return jnp.stack(rows, axis=0)


def mru_cell_pallas(inp_nchw, ht_nchw, params, *, batch_tile=1):
    """Forward of MRU_Cell (stride=1, deconv=False, norm_input=True, sn=False).

    Accepts / returns NCHW.  The kernel sees (batch_tile, C, H*W) tiles, i.e.
    the flattened spatial axis sits on the 128-lane axis; NCHW already has
    H*W contiguous so only free reshapes happen at the boundary.
    `batch_tile` packs several images into one grid step (amortizes per-step
    overhead on single-TensorCore v5e/v6e); the default of 1 keeps grid=(N,)
    parallel so both v7x TensorCores are used when N >= 2.
    """
    inp_nchw = inp_nchw.astype(jnp.float32)
    ht_nchw = ht_nchw.astype(jnp.float32)
    N, Ci, H, W = inp_nchw.shape
    Ch = ht_nchw.shape[1]
    Cf = params["w_h1"].shape[-1]
    use_proj = (Ch != Cf)
    HW = H * W
    assert N % batch_tile == 0, (N, batch_tile)

    inp = inp_nchw.reshape(N, Ci, HW)
    ht = ht_nchw.reshape(N, Ch, HW)
    masks = _tap_masks(H, W)                                    # (8, H*W)

    col = lambda v: v.reshape(-1, 1)
    w_rg = params["w_rg"]                                       # (3,3,Ch+Ci,Ch)
    w_rg_h = _w_flat(w_rg[:, :, :Ch, :])                        # (Ch, 9*Ch)
    # Fuse the two convs that share `inp` into one matmul with Cout = 2*Ch.
    w_in = jnp.concatenate([_w_flat(w_rg[:, :, Ch:, :]),
                            _w_flat(params["w_img"])], axis=0)  # (2*Ch, 9*Ci)
    b_in = jnp.concatenate([params["b_rg"], params["b_img"]]).reshape(-1, 1)
    w_h1, b_h1 = _w_flat(params["w_h1"]), col(params["b_h1"])
    w_h2, b_h2 = _w_flat(params["w_h2"]), col(params["b_h2"])
    if use_proj:
        w_pr, b_pr = _w_flat(params["w_pr"]), col(params["b_pr"])
    else:                                   # placeholders, never read in-kernel
        w_pr = jnp.zeros((Cf, Ch), jnp.float32)
        b_pr = jnp.zeros((Cf, 1), jnp.float32)

    const_args = [masks, w_rg_h, w_in, b_in, w_h1, b_h1, w_h2, b_h2, w_pr, b_pr]

    def act_spec(c):
        return pl.BlockSpec((batch_tile, c, HW), lambda n: (n, 0, 0))

    def full_spec(shape):
        nd = len(shape)
        return pl.BlockSpec(shape, lambda n, _nd=nd: (0,) * _nd)

    kernel = functools.partial(_mru_kernel, width=W, ch=Ch,
                               use_proj=use_proj, batch_tile=batch_tile)
    # TODO(synk): for GAN-scale spatial sizes, tile H (with a 1-row halo) and
    #             set vmem_limit_bytes so blocks fit v7x's 64 MiB VMEM.
    out = pl.pallas_call(
        kernel,
        out_shape=jax.ShapeDtypeStruct((N, Cf, HW), jnp.float32),
        grid=(N // batch_tile,),
        in_specs=[act_spec(Ci), act_spec(Ch)]
                 + [full_spec(a.shape) for a in const_args],
        out_specs=act_spec(Cf),
        compiler_params=pltpu.CompilerParams(
            dimension_semantics=("parallel",)),
    )(inp, ht, *const_args)
    return out.reshape(N, Cf, H, W)


# --------------------------- pure-JAX reference ---------------------------- #

def _conv_same_ref(x_nhwc, w_hwio, bias):
    out = jax.lax.conv_general_dilated(
        x_nhwc, w_hwio, window_strides=(1, 1), padding="SAME",
        dimension_numbers=("NHWC", "HWIO", "NHWC"))
    return out + bias


def mru_cell_ref(inp_nchw, ht_nchw, params):
    inp = jnp.transpose(inp_nchw, (0, 2, 3, 1)).astype(jnp.float32)
    ht = jnp.transpose(ht_nchw, (0, 2, 3, 1)).astype(jnp.float32)
    ht_orig = ht
    Cf = params["w_h1"].shape[-1]

    full_inp = jnp.concatenate([_adn(ht), inp], axis=-1)
    rg = _adn(_conv_same_ref(full_inp, params["w_rg"], params["b_rg"]))
    mn = jnp.min(rg, axis=(1, 2), keepdims=True)
    mx = jnp.max(rg, axis=(1, 2), keepdims=True)
    rg = (rg - mn) / (mx - mn)

    img_new = _conv_same_ref(inp, params["w_img"], params["b_img"])
    ht_plus = ht + rg * img_new
    h_new = _adn(ht_plus)
    h_new = _adn(_conv_same_ref(h_new, params["w_h1"], params["b_h1"]))
    h_new = _conv_same_ref(h_new, params["w_h2"], params["b_h2"])
    if ht.shape[-1] != Cf:
        ht_orig = _conv_same_ref(ht_orig, params["w_pr"], params["b_pr"])
    out = ht_orig + h_new
    return jnp.transpose(out, (0, 3, 1, 2))


# ------------------------------- params ------------------------------------ #

def _init_conv(key, kh, kw, cin, cout):
    """Xavier-uniform weight (HWIO) + PyTorch default uniform bias."""
    kwk, kbk = jax.random.split(key)
    fan_in = cin * kh * kw
    fan_out = cout * kh * kw
    bw = (6.0 / (fan_in + fan_out)) ** 0.5
    w = jax.random.uniform(kwk, (kh, kw, cin, cout), jnp.float32, -bw, bw)
    bb = 1.0 / (fan_in ** 0.5)
    bvec = jax.random.uniform(kbk, (cout,), jnp.float32, -bb, bb)
    return w, bvec


if __name__ == "__main__":
    key = jax.random.PRNGKey(0)
    # batch=2, inp channels=4, hidden_depth=4, filter_depth=8, spatial=16
    N, Ci, Ch, Cf, H, W = 2, 4, 4, 8, 16, 16
    k_inp, k_ht, k1, k2, k3, k4, k5 = jax.random.split(key, 7)
    inp = jax.random.normal(k_inp, (N, Ci, H, W), jnp.float32)   # NCHW like torch
    ht = jax.random.normal(k_ht, (N, Ch, H, W), jnp.float32)

    params = {}
    params["w_rg"], params["b_rg"] = _init_conv(k1, 3, 3, Ch + Ci, Ch)
    params["w_img"], params["b_img"] = _init_conv(k2, 3, 3, Ci, Ch)
    params["w_h1"], params["b_h1"] = _init_conv(k3, 3, 3, Ch, Cf)
    params["w_h2"], params["b_h2"] = _init_conv(k4, 3, 3, Cf, Cf)
    params["w_pr"], params["b_pr"] = _init_conv(k5, 1, 1, Ch, Cf)

    out = jax.block_until_ready(mru_cell_pallas(inp, ht, params))
    ref = jax.block_until_ready(mru_cell_ref(inp, ht, params))

    assert out.shape == (N, Cf, H, W), out.shape
    max_err = float(jnp.max(jnp.abs(out - ref)))
    assert jnp.allclose(out, ref, atol=2e-2, rtol=2e-2), max_err
    print("KERNEL_OK")
</pallas_src>

<mosaic_0001>
module attributes {stable_mosaic.version = 11 : i64} {
  func.func @_mru_kernel(%arg0: i32, %arg1: memref<1x4x256xf32, #tpu.memory_space<vmem>>, %arg2: memref<1x4x256xf32, #tpu.memory_space<vmem>>, %arg3: memref<8x256xf32, #tpu.memory_space<vmem>>, %arg4: memref<4x36xf32, #tpu.memory_space<vmem>>, %arg5: memref<8x36xf32, #tpu.memory_space<vmem>>, %arg6: memref<8x1xf32, #tpu.memory_space<vmem>>, %arg7: memref<8x36xf32, #tpu.memory_space<vmem>>, %arg8: memref<8x1xf32, #tpu.memory_space<vmem>>, %arg9: memref<8x72xf32, #tpu.memory_space<vmem>>, %arg10: memref<8x1xf32, #tpu.memory_space<vmem>>, %arg11: memref<8x4xf32, #tpu.memory_space<vmem>>, %arg12: memref<8x1xf32, #tpu.memory_space<vmem>>, %arg13: memref<1x8x256xf32, #tpu.memory_space<vmem>>) attributes {dimension_semantics = [#tpu.dimension_semantics<parallel>], iteration_bounds = array<i64: 2>, scalar_prefetch = 0 : i64, scratch_operands = 0 : i64, tpu.core_type = #tpu.core_type<tc>, window_params = [{transform_indices = @transform_0, window_bounds = array<i64: 1, 4, 256>}, {transform_indices = @transform_1, window_bounds = array<i64: 1, 4, 256>}, {pipeline_mode = #tpu.pipeline_mode<synchronous>, transform_indices = @transform_2, window_bounds = array<i64: 8, 256>}, {pipeline_mode = #tpu.pipeline_mode<synchronous>, transform_indices = @transform_3, window_bounds = array<i64: 4, 36>}, {pipeline_mode = #tpu.pipeline_mode<synchronous>, transform_indices = @transform_4, window_bounds = array<i64: 8, 36>}, {pipeline_mode = #tpu.pipeline_mode<synchronous>, transform_indices = @transform_5, window_bounds = array<i64: 8, 1>}, {pipeline_mode = #tpu.pipeline_mode<synchronous>, transform_indices = @transform_6, window_bounds = array<i64: 8, 36>}, {pipeline_mode = #tpu.pipeline_mode<synchronous>, transform_indices = @transform_7, window_bounds = array<i64: 8, 1>}, {pipeline_mode = #tpu.pipeline_mode<synchronous>, transform_indices = @transform_8, window_bounds = array<i64: 8, 72>}, {pipeline_mode = #tpu.pipeline_mode<synchronous>, transform_indices = @transform_9, window_bounds = array<i64: 8, 1>}, {pipeline_mode = #tpu.pipeline_mode<synchronous>, transform_indices = @transform_10, window_bounds = array<i64: 8, 4>}, {pipeline_mode = #tpu.pipeline_mode<synchronous>, transform_indices = @transform_11, window_bounds = array<i64: 8, 1>}, {transform_indices = @transform_12, window_bounds = array<i64: 1, 8, 256>}]} {
    %c0 = arith.constant 0 : index
    %c0_0 = arith.constant 0 : index
    %0 = vector.load %arg3[%c0, %c0_0] : memref<8x256xf32, #tpu.memory_space<vmem>>, vector<8x256xf32>
    %c0_1 = arith.constant 0 : index
    %c0_2 = arith.constant 0 : index
    %1 = vector.load %arg4[%c0_1, %c0_2] : memref<4x36xf32, #tpu.memory_space<vmem>>, vector<4x36xf32>
    %c0_3 = arith.constant 0 : index
    %c0_4 = arith.constant 0 : index
    %2 = vector.load %arg5[%c0_3, %c0_4] : memref<8x36xf32, #tpu.memory_space<vmem>>, vector<8x36xf32>
    %c0_5 = arith.constant 0 : index
    %c0_6 = arith.constant 0 : index
    %3 = vector.load %arg6[%c0_5, %c0_6] : memref<8x1xf32, #tpu.memory_space<vmem>>, vector<8x1xf32>
    %c0_7 = arith.constant 0 : index
    %c0_8 = arith.constant 0 : index
    %4 = vector.load %arg7[%c0_7, %c0_8] : memref<8x36xf32, #tpu.memory_space<vmem>>, vector<8x36xf32>
    %c0_9 = arith.constant 0 : index
    %c0_10 = arith.constant 0 : index
    %5 = vector.load %arg8[%c0_9, %c0_10] : memref<8x1xf32, #tpu.memory_space<vmem>>, vector<8x1xf32>
    %c0_11 = arith.constant 0 : index
    %c0_12 = arith.constant 0 : index
    %6 = vector.load %arg9[%c0_11, %c0_12] : memref<8x72xf32, #tpu.memory_space<vmem>>, vector<8x72xf32>
    %c0_13 = arith.constant 0 : index
    %c0_14 = arith.constant 0 : index
    %7 = vector.load %arg10[%c0_13, %c0_14] : memref<8x1xf32, #tpu.memory_space<vmem>>, vector<8x1xf32>
    %c0_15 = arith.constant 0 : index
    %c0_16 = arith.constant 0 : index
    %c0_17 = arith.constant 0 : index
    %8 = vector.load %arg1[%c0_15, %c0_16, %c0_17] : memref<1x4x256xf32, #tpu.memory_space<vmem>>, vector<1x4x256xf32>
    %9 = vector.shape_cast %8 : vector<1x4x256xf32> to vector<4x256xf32>
    %c0_18 = arith.constant 0 : index
    %c0_19 = arith.constant 0 : index
    %c0_20 = arith.constant 0 : index
    %10 = vector.load %arg2[%c0_18, %c0_19, %c0_20] : memref<1x4x256xf32, #tpu.memory_space<vmem>>, vector<1x4x256xf32>
    %11 = vector.shape_cast %10 : vector<1x4x256xf32> to vector<4x256xf32>
    %cst = arith.constant 0.000000e+00 : f32
    %12 = vector.broadcast %cst : f32 to vector<4x256xf32>
    %13 = arith.cmpf ogt, %11, %12 : vector<4x256xf32>
    %cst_21 = arith.constant 2.000000e-01 : f32
    %14 = vector.broadcast %cst_21 : f32 to vector<4x256xf32>
    %15 = arith.mulf %14, %11 : vector<4x256xf32>
    %16 = arith.select %13, %11, %15 : vector<4x256xi1>, vector<4x256xf32>
    %c17_i32 = arith.constant 17 : i32
    %17 = tpu.dynamic_rotate %16 by %c17_i32 dim 1 : vector<4x256xf32>, i32 -> vector<4x256xf32>
    %18 = vector.extract_strided_slice %0 {offsets = [0, 0], sizes = [1, 256], strides = [1, 1]} : vector<8x256xf32> to vector<1x256xf32>
    %19 = vector.broadcast %18 : vector<1x256xf32> to vector<4x256xf32>
    %20 = arith.mulf %17, %19 : vector<4x256xf32>
    %c16_i32 = arith.constant 16 : i32
    %21 = tpu.dynamic_rotate %16 by %c16_i32 dim 1 : vector<4x256xf32>, i32 -> vector<4x256xf32>
    %22 = vector.extract_strided_slice %0 {offsets = [1, 0], sizes = [1, 256], strides = [1, 1]} : vector<8x256xf32> to vector<1x256xf32>
    %23 = vector.broadcast %22 : vector<1x256xf32> to vector<4x256xf32>
    %24 = arith.mulf %21, %23 : vector<4x256xf32>
    %c15_i32 = arith.constant 15 : i32
    %25 = tpu.dynamic_rotate %16 by %c15_i32 dim 1 : vector<4x256xf32>, i32 -> vector<4x256xf32>
    %26 = vector.extract_strided_slice %0 {offsets = [2, 0], sizes = [1, 256], strides = [1, 1]} : vector<8x256xf32> to vector<1x256xf32>
    %27 = vector.broadcast %26 : vector<1x256xf32> to vector<4x256xf32>
    %28 = arith.mulf %25, %27 : vector<4x256xf32>
    %c1_i32 = arith.constant 1 : i32
    %29 = tpu.dynamic_rotate %16 by %c1_i32 dim 1 : vector<4x256xf32>, i32 -> vector<4x256xf32>
    %30 = vector.extract_strided_slice %0 {offsets = [3, 0], sizes = [1, 256], strides = [1, 1]} : vector<8x256xf32> to vector<1x256xf32>
    %31 = vector.broadcast %30 : vector<1x256xf32> to vector<4x256xf32>
    %32 = arith.mulf %29, %31 : vector<4x256xf32>
    %c255_i32 = arith.constant 255 : i32
    %33 = tpu.dynamic_rotate %16 by %c255_i32 dim 1 : vector<4x256xf32>, i32 -> vector<4x256xf32>
    %34 = vector.extract_strided_slice %0 {offsets = [4, 0], sizes = [1, 256], strides = [1, 1]} : vector<8x256xf32> to vector<1x256xf32>
    %35 = vector.broadcast %34 : vector<1x256xf32> to vector<4x256xf32>
    %36 = arith.mulf %33, %35 : vector<4x256xf32>
    %c241_i32 = arith.constant 241 : i32
    %37 = tpu.dynamic_rotate %16 by %c241_i32 dim 1 : vector<4x256xf32>, i32 -> vector<4x256xf32>
    %38 = vector.extract_strided_slice %0 {offsets = [5, 0], sizes = [1, 256], strides = [1, 1]} : vector<8x256xf32> to vector<1x256xf32>
    %39 = vector.broadcast %38 : vector<1x256xf32> to vector<4x256xf32>
    %40 = arith.mulf %37, %39 : vector<4x256xf32>
    %c240_i32 = arith.constant 240 : i32
    %41 = tpu.dynamic_rotate %16 by %c240_i32 dim 1 : vector<4x256xf32>, i32 -> vector<4x256xf32>
    %42 = vector.extract_strided_slice %0 {offsets = [6, 0], sizes = [1, 256], strides = [1, 1]} : vector<8x256xf32> to vector<1x256xf32>
    %43 = vector.broadcast %42 : vector<1x256xf32> to vector<4x256xf32>
    %44 = arith.mulf %41, %43 : vector<4x256xf32>
    %c239_i32 = arith.constant 239 : i32
    %45 = tpu.dynamic_rotate %16 by %c239_i32 dim 1 : vector<4x256xf32>, i32 -> vector<4x256xf32>
    %46 = vector.extract_strided_slice %0 {offsets = [7, 0], sizes = [1, 256], strides = [1, 1]} : vector<8x256xf32> to vector<1x256xf32>
    %47 = vector.broadcast %46 : vector<1x256xf32> to vector<4x256xf32>
    %48 = arith.mulf %45, %47 : vector<4x256xf32>
    %49 = tpu.concatenate %20, %24, %28, %32, %16, %36, %40, %44, %48 in 0 : vector<4x256xf32>, vector<4x256xf32>, vector<4x256xf32>, vector<4x256xf32>, vector<4x256xf32>, vector<4x256xf32>, vector<4x256xf32>, vector<4x256xf32>, vector<4x256xf32> -> vector<36x256xf32>
    %cst_22 = arith.constant dense<0.000000e+00> : vector<4x256xf32>
    %50 = tpu.matmul %1, %49, %cst_22 {dimension_numbers = #tpu.dot_dimension_numbers<[1], [0], [0], [1], [0, 0, 1, 1], [], []>} : vector<4x36xf32>, vector<36x256xf32>, vector<4x256xf32> -> vector<4x256xf32>
    %c17_i32_23 = arith.constant 17 : i32
    %51 = tpu.dynamic_rotate %9 by %c17_i32_23 dim 1 : vector<4x256xf32>, i32 -> vector<4x256xf32>
    %52 = vector.extract_strided_slice %0 {offsets = [0, 0], sizes = [1, 256], strides = [1, 1]} : vector<8x256xf32> to vector<1x256xf32>
    %53 = vector.broadcast %52 : vector<1x256xf32> to vector<4x256xf32>
    %54 = arith.mulf %51, %53 : vector<4x256xf32>
    %c16_i32_24 = arith.constant 16 : i32
    %55 = tpu.dynamic_rotate %9 by %c16_i32_24 dim 1 : vector<4x256xf32>, i32 -> vector<4x256xf32>
    %56 = vector.extract_strided_slice %0 {offsets = [1, 0], sizes = [1, 256], strides = [1, 1]} : vector<8x256xf32> to vector<1x256xf32>
    %57 = vector.broadcast %56 : vector<1x256xf32> to vector<4x256xf32>
    %58 = arith.mulf %55, %57 : vector<4x256xf32>
    %c15_i32_25 = arith.constant 15 : i32
    %59 = tpu.dynamic_rotate %9 by %c15_i32_25 dim 1 : vector<4x256xf32>, i32 -> vector<4x256xf32>
    %60 = vector.extract_strided_slice %0 {offsets = [2, 0], sizes = [1, 256], strides = [1, 1]} : vector<8x256xf32> to vector<1x256xf32>
    %61 = vector.broadcast %60 : vector<1x256xf32> to vector<4x256xf32>
    %62 = arith.mulf %59, %61 : vector<4x256xf32>
    %c1_i32_26 = arith.constant 1 : i32
    %63 = tpu.dynamic_rotate %9 by %c1_i32_26 dim 1 : vector<4x256xf32>, i32 -> vector<4x256xf32>
    %64 = vector.extract_strided_slice %0 {offsets = [3, 0], sizes = [1, 256], strides = [1, 1]} : vector<8x256xf32> to vector<1x256xf32>
    %65 = vector.broadcast %64 : vector<1x256xf32> to vector<4x256xf32>
    %66 = arith.mulf %63, %65 : vector<4x256xf32>
    %c255_i32_27 = arith.constant 255 : i32
    %67 = tpu.dynamic_rotate %9 by %c255_i32_27 dim 1 : vector<4x256xf32>, i32 -> vector<4x256xf32>
    %68 = vector.extract_strided_slice %0 {offsets = [4, 0], sizes = [1, 256], strides = [1, 1]} : vector<8x256xf32> to vector<1x256xf32>
    %69 = vector.broadcast %68 : vector<1x256xf32> to vector<4x256xf32>
    %70 = arith.mulf %67, %69 : vector<4x256xf32>
    %c241_i32_28 = arith.constant 241 : i32
    %71 = tpu.dynamic_rotate %9 by %c241_i32_28 dim 1 : vector<4x256xf32>, i32 -> vector<4x256xf32>
    %72 = vector.extract_strided_slice %0 {offsets = [5, 0], sizes = [1, 256], strides = [1, 1]} : vector<8x256xf32> to vector<1x256xf32>
    %73 = vector.broadcast %72 : vector<1x256xf32> to vector<4x256xf32>
    %74 = arith.mulf %71, %73 : vector<4x256xf32>
    %c240_i32_29 = arith.constant 240 : i32
    %75 = tpu.dynamic_rotate %9 by %c240_i32_29 dim 1 : vector<4x256xf32>, i32 -> vector<4x256xf32>
    %76 = vector.extract_strided_slice %0 {offsets = [6, 0], sizes = [1, 256], strides = [1, 1]} : vector<8x256xf32> to vector<1x256xf32>
    %77 = vector.broadcast %76 : vector<1x256xf32> to vector<4x256xf32>
    %78 = arith.mulf %75, %77 : vector<4x256xf32>
    %c239_i32_30 = arith.constant 239 : i32
    %79 = tpu.dynamic_rotate %9 by %c239_i32_30 dim 1 : vector<4x256xf32>, i32 -> vector<4x256xf32>
    %80 = vector.extract_strided_slice %0 {offsets = [7, 0], sizes = [1, 256], strides = [1, 1]} : vector<8x256xf32> to vector<1x256xf32>
    %81 = vector.broadcast %80 : vector<1x256xf32> to vector<4x256xf32>
    %82 = arith.mulf %79, %81 : vector<4x256xf32>
    %83 = tpu.concatenate %54, %58, %62, %66, %9, %70, %74, %78, %82 in 0 : vector<4x256xf32>, vector<4x256xf32>, vector<4x256xf32>, vector<4x256xf32>, vector<4x256xf32>, vector<4x256xf32>, vector<4x256xf32>, vector<4x256xf32>, vector<4x256xf32> -> vector<36x256xf32>
    %cst_31 = arith.constant dense<0.000000e+00> : vector<8x256xf32>
    %84 = tpu.matmul %2, %83, %cst_31 {dimension_numbers = #tpu.dot_dimension_numbers<[1], [0], [0], [1], [0, 0, 1, 1], [], []>} : vector<8x36xf32>, vector<36x256xf32>, vector<8x256xf32> -> vector<8x256xf32>
    %85 = vector.broadcast %3 : vector<8x1xf32> to vector<8x256xf32>
    %86 = arith.addf %84, %85 : vector<8x256xf32>
    %87 = vector.extract_strided_slice %86 {offsets = [0, 0], sizes = [4, 256], strides = [1, 1]} : vector<8x256xf32> to vector<4x256xf32>
    %88 = arith.addf %50, %87 : vector<4x256xf32>
    %cst_32 = arith.constant 0.000000e+00 : f32
    %89 = vector.broadcast %cst_32 : f32 to vector<4x256xf32>
    %90 = arith.cmpf ogt, %88, %89 : vector<4x256xf32>
    %cst_33 = arith.constant 2.000000e-01 : f32
    %91 = vector.broadcast %cst_33 : f32 to vector<4x256xf32>
    %92 = arith.mulf %91, %88 : vector<4x256xf32>
    %93 = arith.select %90, %88, %92 : vector<4x256xi1>, vector<4x256xf32>
    %94 = vector.extract_strided_slice %86 {offsets = [4, 0], sizes = [4, 256], strides = [1, 1]} : vector<8x256xf32> to vector<4x256xf32>
    %cst_34 = arith.constant dense<0x7F800000> : vector<4xf32>
    %95 = vector.multi_reduction <minimumf>, %93, %cst_34 [1] : vector<4x256xf32> to vector<4xf32>
    %96 = vector.shape_cast %95 : vector<4xf32> to vector<4x1xf32>
    %cst_35 = arith.constant dense<0xFF800000> : vector<4xf32>
    %97 = vector.multi_reduction <maximumf>, %93, %cst_35 [1] : vector<4x256xf32> to vector<4xf32>
    %98 = vector.shape_cast %97 : vector<4xf32> to vector<4x1xf32>
    %99 = arith.subf %98, %96 : vector<4x1xf32>
    %cst_36 = arith.constant 9.99999997E-7 : f32
    %100 = vector.broadcast %cst_36 : f32 to vector<4x1xf32>
    %101 = arith.addf %99, %100 : vector<4x1xf32>
    %102 = tpu.reciprocal %101 {approx = true} : vector<4x1xf32> -> vector<4x1xf32>
    %103 = vector.broadcast %96 : vector<4x1xf32> to vector<4x256xf32>
    %104 = arith.subf %93, %103 : vector<4x256xf32>
    %105 = vector.broadcast %102 : vector<4x1xf32> to vector<4x256xf32>
    %106 = arith.mulf %104, %105 : vector<4x256xf32>
    %107 = arith.mulf %106, %94 : vector<4x256xf32>
    %108 = arith.addf %11, %107 : vector<4x256xf32>
    %cst_37 = arith.constant 0.000000e+00 : f32
    %109 = vector.broadcast %cst_37 : f32 to vector<4x256xf32>
    %110 = arith.cmpf ogt, %108, %109 : vector<4x256xf32>
    %cst_38 = arith.constant 2.000000e-01 : f32
    %111 = vector.broadcast %cst_38 : f32 to vector<4x256xf32>
    %112 = arith.mulf %111, %108 : vector<4x256xf32>
    %113 = arith.select %110, %108, %112 : vector<4x256xi1>, vector<4x256xf32>
    %c17_i32_39 = arith.constant 17 : i32
    %114 = tpu.dynamic_rotate %113 by %c17_i32_39 dim 1 : vector<4x256xf32>, i32 -> vector<4x256xf32>
    %115 = vector.extract_strided_slice %0 {offsets = [0, 0], sizes = [1, 256], strides = [1, 1]} : vector<8x256xf32> to vector<1x256xf32>
    %116 = vector.broadcast %115 : vector<1x256xf32> to vector<4x256xf32>
    %117 = arith.mulf %114, %116 : vector<4x256xf32>
    %c16_i32_40 = arith.constant 16 : i32
    %118 = tpu.dynamic_rotate %113 by %c16_i32_40 dim 1 : vector<4x256xf32>, i32 -> vector<4x256xf32>
    %119 = vector.extract_strided_slice %0 {offsets = [1, 0], sizes = [1, 256], strides = [1, 1]} : vector<8x256xf32> to vector<1x256xf32>
    %120 = vector.broadcast %119 : vector<1x256xf32> to vector<4x256xf32>
    %121 = arith.mulf %118, %120 : vector<4x256xf32>
    %c15_i32_41 = arith.constant 15 : i32
    %122 = tpu.dynamic_rotate %113 by %c15_i32_41 dim 1 : vector<4x256xf32>, i32 -> vector<4x256xf32>
    %123 = vector.extract_strided_slice %0 {offsets = [2, 0], sizes = [1, 256], strides = [1, 1]} : vector<8x256xf32> to vector<1x256xf32>
    %124 = vector.broadcast %123 : vector<1x256xf32> to vector<4x256xf32>
    %125 = arith.mulf %122, %124 : vector<4x256xf32>
    %c1_i32_42 = arith.constant 1 : i32
    %126 = tpu.dynamic_rotate %113 by %c1_i32_42 dim 1 : vector<4x256xf32>, i32 -> vector<4x256xf32>
    %127 = vector.extract_strided_slice %0 {offsets = [3, 0], sizes = [1, 256], strides = [1, 1]} : vector<8x256xf32> to vector<1x256xf32>
    %128 = vector.broadcast %127 : vector<1x256xf32> to vector<4x256xf32>
    %129 = arith.mulf %126, %128 : vector<4x256xf32>
    %c255_i32_43 = arith.constant 255 : i32
    %130 = tpu.dynamic_rotate %113 by %c255_i32_43 dim 1 : vector<4x256xf32>, i32 -> vector<4x256xf32>
    %131 = vector.extract_strided_slice %0 {offsets = [4, 0], sizes = [1, 256], strides = [1, 1]} : vector<8x256xf32> to vector<1x256xf32>
    %132 = vector.broadcast %131 : vector<1x256xf32> to vector<4x256xf32>
    %133 = arith.mulf %130, %132 : vector<4x256xf32>
    %c241_i32_44 = arith.constant 241 : i32
    %134 = tpu.dynamic_rotate %113 by %c241_i32_44 dim 1 : vector<4x256xf32>, i32 -> vector<4x256xf32>
    %135 = vector.extract_strided_slice %0 {offsets = [5, 0], sizes = [1, 256], strides = [1, 1]} : vector<8x256xf32> to vector<1x256xf32>
    %136 = vector.broadcast %135 : vector<1x256xf32> to vector<4x256xf32>
    %137 = arith.mulf %134, %136 : vector<4x256xf32>
    %c240_i32_45 = arith.constant 240 : i32
    %138 = tpu.dynamic_rotate %113 by %c240_i32_45 dim 1 : vector<4x256xf32>, i32 -> vector<4x256xf32>
    %139 = vector.extract_strided_slice %0 {offsets = [6, 0], sizes = [1, 256], strides = [1, 1]} : vector<8x256xf32> to vector<1x256xf32>
    %140 = vector.broadcast %139 : vector<1x256xf32> to vector<4x256xf32>
    %141 = arith.mulf %138, %140 : vector<4x256xf32>
    %c239_i32_46 = arith.constant 239 : i32
    %142 = tpu.dynamic_rotate %113 by %c239_i32_46 dim 1 : vector<4x256xf32>, i32 -> vector<4x256xf32>
    %143 = vector.extract_strided_slice %0 {offsets = [7, 0], sizes = [1, 256], strides = [1, 1]} : vector<8x256xf32> to vector<1x256xf32>
    %144 = vector.broadcast %143 : vector<1x256xf32> to vector<4x256xf32>
    %145 = arith.mulf %142, %144 : vector<4x256xf32>
    %146 = tpu.concatenate %117, %121, %125, %129, %113, %133, %137, %141, %145 in 0 : vector<4x256xf32>, vector<4x256xf32>, vector<4x256xf32>, vector<4x256xf32>, vector<4x256xf32>, vector<4x256xf32>, vector<4x256xf32>, vector<4x256xf32>, vector<4x256xf32> -> vector<36x256xf32>
    %cst_47 = arith.constant dense<0.000000e+00> : vector<8x256xf32>
    %147 = tpu.matmul %4, %146, %cst_47 {dimension_numbers = #tpu.dot_dimension_numbers<[1], [0], [0], [1], [0, 0, 1, 1], [], []>} : vector<8x36xf32>, vector<36x256xf32>, vector<8x256xf32> -> vector<8x256xf32>
    %148 = vector.broadcast %5 : vector<8x1xf32> to vector<8x256xf32>
    %149 = arith.addf %147, %148 : vector<8x256xf32>
    %cst_48 = arith.constant 0.000000e+00 : f32
    %150 = vector.broadcast %cst_48 : f32 to vector<8x256xf32>
    %151 = arith.cmpf ogt, %149, %150 : vector<8x256xf32>
    %cst_49 = arith.constant 2.000000e-01 : f32
    %152 = vector.broadcast %cst_49 : f32 to vector<8x256xf32>
    %153 = arith.mulf %152, %149 : vector<8x256xf32>
    %154 = arith.select %151, %149, %153 : vector<8x256xi1>, vector<8x256xf32>
    %c17_i32_50 = arith.constant 17 : i32
    %155 = tpu.dynamic_rotate %154 by %c17_i32_50 dim 1 : vector<8x256xf32>, i32 -> vector<8x256xf32>
    %156 = vector.extract_strided_slice %0 {offsets = [0, 0], sizes = [1, 256], strides = [1, 1]} : vector<8x256xf32> to vector<1x256xf32>
    %157 = vector.broadcast %156 : vector<1x256xf32> to vector<8x256xf32>
    %158 = arith.mulf %155, %157 : vector<8x256xf32>
    %c16_i32_51 = arith.constant 16 : i32
    %159 = tpu.dynamic_rotate %154 by %c16_i32_51 dim 1 : vector<8x256xf32>, i32 -> vector<8x256xf32>
    %160 = vector.extract_strided_slice %0 {offsets = [1, 0], sizes = [1, 256], strides = [1, 1]} : vector<8x256xf32> to vector<1x256xf32>
    %161 = vector.broadcast %160 : vector<1x256xf32> to vector<8x256xf32>
    %162 = arith.mulf %159, %161 : vector<8x256xf32>
    %c15_i32_52 = arith.constant 15 : i32
    %163 = tpu.dynamic_rotate %154 by %c15_i32_52 dim 1 : vector<8x256xf32>, i32 -> vector<8x256xf32>
    %164 = vector.extract_strided_slice %0 {offsets = [2, 0], sizes = [1, 256], strides = [1, 1]} : vector<8x256xf32> to vector<1x256xf32>
    %165 = vector.broadcast %164 : vector<1x256xf32> to vector<8x256xf32>
    %166 = arith.mulf %163, %165 : vector<8x256xf32>
    %c1_i32_53 = arith.constant 1 : i32
    %167 = tpu.dynamic_rotate %154 by %c1_i32_53 dim 1 : vector<8x256xf32>, i32 -> vector<8x256xf32>
    %168 = vector.extract_strided_slice %0 {offsets = [3, 0], sizes = [1, 256], strides = [1, 1]} : vector<8x256xf32> to vector<1x256xf32>
    %169 = vector.broadcast %168 : vector<1x256xf32> to vector<8x256xf32>
    %170 = arith.mulf %167, %169 : vector<8x256xf32>
    %c255_i32_54 = arith.constant 255 : i32
    %171 = tpu.dynamic_rotate %154 by %c255_i32_54 dim 1 : vector<8x256xf32>, i32 -> vector<8x256xf32>
    %172 = vector.extract_strided_slice %0 {offsets = [4, 0], sizes = [1, 256], strides = [1, 1]} : vector<8x256xf32> to vector<1x256xf32>
    %173 = vector.broadcast %172 : vector<1x256xf32> to vector<8x256xf32>
    %174 = arith.mulf %171, %173 : vector<8x256xf32>
    %c241_i32_55 = arith.constant 241 : i32
    %175 = tpu.dynamic_rotate %154 by %c241_i32_55 dim 1 : vector<8x256xf32>, i32 -> vector<8x256xf32>
    %176 = vector.extract_strided_slice %0 {offsets = [5, 0], sizes = [1, 256], strides = [1, 1]} : vector<8x256xf32> to vector<1x256xf32>
    %177 = vector.broadcast %176 : vector<1x256xf32> to vector<8x256xf32>
    %178 = arith.mulf %175, %177 : vector<8x256xf32>
    %c240_i32_56 = arith.constant 240 : i32
    %179 = tpu.dynamic_rotate %154 by %c240_i32_56 dim 1 : vector<8x256xf32>, i32 -> vector<8x256xf32>
    %180 = vector.extract_strided_slice %0 {offsets = [6, 0], sizes = [1, 256], strides = [1, 1]} : vector<8x256xf32> to vector<1x256xf32>
    %181 = vector.broadcast %180 : vector<1x256xf32> to vector<8x256xf32>
    %182 = arith.mulf %179, %181 : vector<8x256xf32>
    %c239_i32_57 = arith.constant 239 : i32
    %183 = tpu.dynamic_rotate %154 by %c239_i32_57 dim 1 : vector<8x256xf32>, i32 -> vector<8x256xf32>
    %184 = vector.extract_strided_slice %0 {offsets = [7, 0], sizes = [1, 256], strides = [1, 1]} : vector<8x256xf32> to vector<1x256xf32>
    %185 = vector.broadcast %184 : vector<1x256xf32> to vector<8x256xf32>
    %186 = arith.mulf %183, %185 : vector<8x256xf32>
    %187 = tpu.concatenate %158, %162, %166, %170, %154, %174, %178, %182, %186 in 0 : vector<8x256xf32>, vector<8x256xf32>, vector<8x256xf32>, vector<8x256xf32>, vector<8x256xf32>, vector<8x256xf32>, vector<8x256xf32>, vector<8x256xf32>, vector<8x256xf32> -> vector<72x256xf32>
    %cst_58 = arith.constant dense<0.000000e+00> : vector<8x256xf32>
    %188 = tpu.matmul %6, %187, %cst_58 {dimension_numbers = #tpu.dot_dimension_numbers<[1], [0], [0], [1], [0, 0, 1, 1], [], []>} : vector<8x72xf32>, vector<72x256xf32>, vector<8x256xf32> -> vector<8x256xf32>
    %189 = vector.broadcast %7 : vector<8x1xf32> to vector<8x256xf32>
    %190 = arith.addf %188, %189 : vector<8x256xf32>
    %c0_59 = arith.constant 0 : index
    %c0_60 = arith.constant 0 : index
    %191 = vector.load %arg11[%c0_59, %c0_60] : memref<8x4xf32, #tpu.memory_space<vmem>>, vector<8x4xf32>
    %cst_61 = arith.constant dense<0.000000e+00> : vector<8x256xf32>
    %192 = tpu.matmul %191, %11, %cst_61 {dimension_numbers = #tpu.dot_dimension_numbers<[1], [0], [0], [1], [0, 0, 1, 1], [], []>} : vector<8x4xf32>, vector<4x256xf32>, vector<8x256xf32> -> vector<8x256xf32>
    %c0_62 = arith.constant 0 : index
    %c0_63 = arith.constant 0 : index
    %193 = vector.load %arg12[%c0_62, %c0_63] : memref<8x1xf32, #tpu.memory_space<vmem>>, vector<8x1xf32>
    %194 = vector.broadcast %193 : vector<8x1xf32> to vector<8x256xf32>
    %195 = arith.addf %192, %194 : vector<8x256xf32>
    %196 = arith.addf %195, %190 : vector<8x256xf32>
    %c0_64 = arith.constant 0 : index
    %c0_65 = arith.constant 0 : index
    %c0_66 = arith.constant 0 : index
    %197 = vector.load %arg13[%c0_64, %c0_65, %c0_66] : memref<1x8x256xf32, #tpu.memory_space<vmem>>, vector<1x8x256xf32>
    %198 = vector.shape_cast %197 : vector<1x8x256xf32> to vector<8x256xf32>
    %199 = vector.shape_cast %196 : vector<8x256xf32> to vector<1x8x256xf32>
    tpu.vector_store %arg13[%c0_64, %c0_65, %c0_66], %199 {strides = array<i32>} : memref<1x8x256xf32, #tpu.memory_space<vmem>>, vector<1x8x256xf32>,
    return
  }
  func.func @transform_0(%arg0: i32) -> (i32, i32, i32) {
    %c0_i32 = arith.constant 0 : i32
    %c0_i32_0 = arith.constant 0 : i32
    %c0_i32_1 = arith.constant 0 : i32
    return %arg0, %c0_i32, %c0_i32_0 : i32, i32, i32
  }
  func.func @transform_1(%arg0: i32) -> (i32, i32, i32) {
    %c0_i32 = arith.constant 0 : i32
    %c0_i32_0 = arith.constant 0 : i32
    %c0_i32_1 = arith.constant 0 : i32
    return %arg0, %c0_i32, %c0_i32_0 : i32, i32, i32
  }
  func.func @transform_2(%arg0: i32) -> (i32, i32) {
    %c0_i32 = arith.constant 0 : i32
    %c0_i32_0 = arith.constant 0 : i32
    %c0_i32_1 = arith.constant 0 : i32
    return %c0_i32, %c0_i32_0 : i32, i32
  }
  func.func @transform_3(%arg0: i32) -> (i32, i32) {
    %c0_i32 = arith.constant 0 : i32
    %c0_i32_0 = arith.constant 0 : i32
    %c0_i32_1 = arith.constant 0 : i32
    return %c0_i32, %c0_i32_0 : i32, i32
  }
  func.func @transform_4(%arg0: i32) -> (i32, i32) {
    %c0_i32 = arith.constant 0 : i32
    %c0_i32_0 = arith.constant 0 : i32
    %c0_i32_1 = arith.constant 0 : i32
    return %c0_i32, %c0_i32_0 : i32, i32
  }
  func.func @transform_5(%arg0: i32) -> (i32, i32) {
    %c0_i32 = arith.constant 0 : i32
    %c0_i32_0 = arith.constant 0 : i32
    %c0_i32_1 = arith.constant 0 : i32
    return %c0_i32, %c0_i32_0 : i32, i32
  }
  func.func @transform_6(%arg0: i32) -> (i32, i32) {
    %c0_i32 = arith.constant 0 : i32
    %c0_i32_0 = arith.constant 0 : i32
    %c0_i32_1 = arith.constant 0 : i32
    return %c0_i32, %c0_i32_0 : i32, i32
  }
  func.func @transform_7(%arg0: i32) -> (i32, i32) {
    %c0_i32 = arith.constant 0 : i32
    %c0_i32_0 = arith.constant 0 : i32
    %c0_i32_1 = arith.constant 0 : i32
    return %c0_i32, %c0_i32_0 : i32, i32
  }
  func.func @transform_8(%arg0: i32) -> (i32, i32) {
    %c0_i32 = arith.constant 0 : i32
    %c0_i32_0 = arith.constant 0 : i32
    %c0_i32_1 = arith.constant 0 : i32
    return %c0_i32, %c0_i32_0 : i32, i32
  }
  func.func @transform_9(%arg0: i32) -> (i32, i32) {
    %c0_i32 = arith.constant 0 : i32
    %c0_i32_0 = arith.constant 0 : i32
    %c0_i32_1 = arith.constant 0 : i32
    return %c0_i32, %c0_i32_0 : i32, i32
  }
  func.func @transform_10(%arg0: i32) -> (i32, i32) {
    %c0_i32 = arith.constant 0 : i32
    %c0_i32_0 = arith.constant 0 : i32
    %c0_i32_1 = arith.constant 0 : i32
    return %c0_i32, %c0_i32_0 : i32, i32
  }
  func.func @transform_11(%arg0: i32) -> (i32, i32) {
    %c0_i32 = arith.constant 0 : i32
    %c0_i32_0 = arith.constant 0 : i32
    %c0_i32_1 = arith.constant 0 : i32
    return %c0_i32, %c0_i32_0 : i32, i32
  }
  func.func @transform_12(%arg0: i32) -> (i32, i32, i32) {
    %c0_i32 = arith.constant 0 : i32
    %c0_i32_0 = arith.constant 0 : i32
    %c0_i32_1 = arith.constant 0 : i32
    return %arg0, %c0_i32, %c0_i32_0 : i32, i32, i32
  }
}

</mosaic_0001>

<llo_original>
// kernel: tpu_custom_call.1
$region0: #{tpu_custom_call.1}
  #allocation0 [shape = 'u32[]', space=smem, size = 0x4, offset = 0x4, fixed_abs, tag = 'smem constant byte address 0x4 - core index']
  #allocation1 [shape = 'u32[144,128]{1,0:T(1,128)}', space=vmem, size = 0x12000, scoped, tag = 'internal scratch']
  %s0 = inlined_call_operand.vmem [shape: f32[2,4,256], index: 0, kind: input, shape index: {}]
  %s1 = inlined_call_operand.vmem [shape: f32[2,4,256], index: 1, kind: input, shape index: {}]
  %s2 = inlined_call_operand.vmem [shape: f32[8,256], index: 2, kind: input, shape index: {}]
  %s3 = inlined_call_operand.hbm [shape: f32[4,36], index: 3, kind: input, shape index: {}]
  %s4 = inlined_call_operand.vmem [shape: f32[8,36], index: 4, kind: input, shape index: {}]
  %s5 = inlined_call_operand.vmem [shape: f32[8,1], index: 5, kind: input, shape index: {}]
  %s6 = inlined_call_operand.vmem [shape: f32[8,36], index: 6, kind: input, shape index: {}]
  %s7 = inlined_call_operand.vmem [shape: f32[8,1], index: 7, kind: input, shape index: {}]
  %s8 = inlined_call_operand.vmem [shape: f32[8,72], index: 8, kind: input, shape index: {}]
  %s9 = inlined_call_operand.vmem [shape: f32[8,1], index: 9, kind: input, shape index: {}]
  %s10 = inlined_call_operand.vmem [shape: f32[8,4], index: 10, kind: input, shape index: {}]
  %s11 = inlined_call_operand.vmem [shape: f32[8,1], index: 11, kind: input, shape index: {}]
  %s12 = inlined_call_operand.hbm [shape: f32[2,8,256], index: 12, kind: output, shape index: {}]
  %s13 = sld [smem:[#allocation0]]
  $region85: #{tpu_custom_call.1} parent=0
    _
  %s15 = ssub.s32 1, %s13
  %s16 = scalar_select 0, %s15, %s13
  $region1: #{tpu_custom_call.1} parent=0
    #allocation2 [shape = 'u8[2048]{0}', space=vmem, size = 0x800, scoped, tag = 'input window, operand 3, single buffered']
    #allocation3 [shape = 's32[2]{0}', space=sflag, size = 0x8, scoped, tag = 'scoped memory for tpu_custom_call.1']
    #allocation4 [shape = 's32[2]{0}', space=sflag, size = 0x8, scoped, tag = 'scoped memory for tpu_custom_call.1']
    #allocation5 [shape = 'u8[16384]{0}', space=vmem, size = 0x4000, scoped, tag = 'output window, operand 0']
    %17 = vsyncpa [#allocation3], 0
    %18 = vsyncpa [#allocation4], 0
    %s19 = scalar_lea.sflag [#allocation4], 1
    %20 = vsyncpa %s19, 0
    loop: start=0, step=1, limit=4
    $region2: #{tpu_custom_call.1} parent=1 // loop_pre_header
      _
    $region3: #{tpu_custom_call.1} parent=1 // loop_header
      %s22 = sphi 0, %s26
      %p23 = scmp.ge.s32.totalorder %s22, 4
      %s32 = sphi 0, %s34
      %s35 = sphi 0, %s32
      %s36 = sphi 0, %s35
      %s52 = sphi 0, %s36
      %s58 = sphi 0, %s60
      %s61 = sphi 0, %s58
      %s62 = sphi 0, %s61
      %s78 = sphi 0, %s62
      %s82 = sphi 0, %s82
      %s84 = sphi 0, %s82
      %s85 = sphi 0, %s84
      %s99 = sphi 0, %s85
      %s103 = sphi 0, %s103
      %s105 = sphi 0, %s103
      %s106 = sphi 0, %s105
      %s120 = sphi 0, %s106
      %s124 = sphi 0, %s124
      %s126 = sphi 0, %s124
      %s127 = sphi 0, %s126
      %s141 = sphi 0, %s127
      %s145 = sphi 0, %s145
      %s147 = sphi 0, %s145
      %s148 = sphi 0, %s147
      %s162 = sphi 0, %s148
      %s166 = sphi 0, %s166
      %s168 = sphi 0, %s166
      %s169 = sphi 0, %s168
      %s183 = sphi 0, %s169
      %s187 = sphi 0, %s187
      %s189 = sphi 0, %s187
      %s190 = sphi 0, %s189
      %s204 = sphi 0, %s190
      %s208 = sphi 0, %s208
      %s210 = sphi 0, %s208
      %s211 = sphi 0, %s210
      %s225 = sphi 0, %s211
      %s229 = sphi 0, %s229
      %s231 = sphi 0, %s229
      %s232 = sphi 0, %s231
      %s246 = sphi 0, %s232
      %s250 = sphi 0, %s250
      %s252 = sphi 0, %s250
      %s253 = sphi 0, %s252
      %s267 = sphi 0, %s253
      %s271 = sphi 0, %s271
      %s273 = sphi 0, %s271
      %s274 = sphi 0, %s273
      %s288 = sphi 0, %s274
      %s294 = sphi 0, %s296
      %s297 = sphi 0, %s294
      %s298 = sphi 0, %s297
      %s314 = sphi 0, %s298
    $region4: #{tpu_custom_call.1} parent=1 // loop_header_branch
      %25 = sbr.rel (%p23) target = $region8
    $region5: #{tpu_custom_call.1} parent=1 // loop_body
      %s27 = ssub.s32 %s22, 1
      %s28 = ssub.s32 %s22, 2
      %s29 = sadd.s32 %s22, 1
      %s30 = ssub.s32 %s22, %s29
      %p31 = scmp.eq.s32.totalorder %s30, 0
      %s33 = sadd.s32 %s32, 1
      %s34 = scalar_select %p31, %s32, %s33
      %p37 = pneg %p31
      %p38 = scmp.eq.s32.totalorder %s22, 1
      %p39 = por %p37, %p38
      %p40 = scmp.ne.s32.totalorder %s32, %s35
      %p41 = scmp.eq.s32.totalorder %s22, 0
      %p42 = por %p40, %p41
      %p43 = scmp.ne.s32.totalorder %s32, %s35
      %p44 = scmp.eq.s32.totalorder %s27, 1
      %p45 = por %p43, %p44
      %p46 = scmp.ne.s32.totalorder %s35, %s36
      %p47 = scmp.eq.s32.totalorder %s27, 0
      %p48 = por %p46, %p47
      %p49 = scmp.ne.s32.totalorder %s35, %s36
      %p50 = scmp.eq.s32.totalorder %s28, 1
      %p51 = por %p49, %p50
      %p53 = scmp.ne.s32.totalorder %s36, %s52
      %p54 = scmp.eq.s32.totalorder %s28, 0
      %p55 = por %p53, %p54
      %s56 = ssub.s32 %s22, %s29
      %p57 = scmp.eq.s32.totalorder %s56, 0
      %s59 = sadd.s32 %s58, 1
      %s60 = scalar_select %p57, %s58, %s59
      %p63 = pneg %p57
      %p64 = scmp.eq.s32.totalorder %s22, 1
      %p65 = por %p63, %p64
      %p66 = scmp.ne.s32.totalorder %s58, %s61
      %p67 = scmp.eq.s32.totalorder %s22, 0
      %p68 = por %p66, %p67
      %p69 = scmp.ne.s32.totalorder %s58, %s61
      %p70 = scmp.eq.s32.totalorder %s27, 1
      %p71 = por %p69, %p70
      %p72 = scmp.ne.s32.totalorder %s61, %s62
      %p73 = scmp.eq.s32.totalorder %s27, 0
      %p74 = por %p72, %p73
      %p75 = scmp.ne.s32.totalorder %s61, %s62
      %p76 = scmp.eq.s32.totalorder %s28, 1
      %p77 = por %p75, %p76
      %p79 = scmp.ne.s32.totalorder %s62, %s78
      %p80 = scmp.eq.s32.totalorder %s28, 0
      %p81 = por %p79, %p80
      %s83 = sadd.s32 %s82, 1
      %p86 = scmp.eq.s32.totalorder %s22, 1
      %p87 = scmp.ne.s32.totalorder %s82, %s84
      %p88 = scmp.eq.s32.totalorder %s22, 0
      %p89 = por %p87, %p88
      %p90 = scmp.ne.s32.totalorder %s82, %s84
      %p91 = scmp.eq.s32.totalorder %s27, 1
      %p92 = por %p90, %p91
      %p93 = scmp.ne.s32.totalorder %s84, %s85
      %p94 = scmp.eq.s32.totalorder %s27, 0
      %p95 = por %p93, %p94
      %p96 = scmp.ne.s32.totalorder %s84, %s85
      %p97 = scmp.eq.s32.totalorder %s28, 1
      %p98 = por %p96, %p97
      %p100 = scmp.ne.s32.totalorder %s85, %s99
      %p101 = scmp.eq.s32.totalorder %s28, 0
      %p102 = por %p100, %p101
      %s104 = sadd.s32 %s103, 1
      %p107 = scmp.eq.s32.totalorder %s22, 1
      %p108 = scmp.ne.s32.totalorder %s103, %s105
      %p109 = scmp.eq.s32.totalorder %s22, 0
      %p110 = por %p108, %p109
      %p111 = scmp.ne.s32.totalorder %s103, %s105
      %p112 = scmp.eq.s32.totalorder %s27, 1
      %p113 = por %p111, %p112
      %p114 = scmp.ne.s32.totalorder %s105, %s106
      %p115 = scmp.eq.s32.totalorder %s27, 0
      %p116 = por %p114, %p115
      %p117 = scmp.ne.s32.totalorder %s105, %s106
      %p118 = scmp.eq.s32.totalorder %s28, 1
      %p119 = por %p117, %p118
      %p121 = scmp.ne.s32.totalorder %s106, %s120
      %p122 = scmp.eq.s32.totalorder %s28, 0
      %p123 = por %p121, %p122
      %s125 = sadd.s32 %s124, 1
      %p128 = scmp.eq.s32.totalorder %s22, 1
      %p129 = scmp.ne.s32.totalorder %s124, %s126
      %p130 = scmp.eq.s32.totalorder %s22, 0
      %p131 = por %p129, %p130
      %p132 = scmp.ne.s32.totalorder %s124, %s126
      %p133 = scmp.eq.s32.totalorder %s27, 1
      %p134 = por %p132, %p133
      %p135 = scmp.ne.s32.totalorder %s126, %s127
      %p136 = scmp.eq.s32.totalorder %s27, 0
      %p137 = por %p135, %p136
      %p138 = scmp.ne.s32.totalorder %s126, %s127
      %p139 = scmp.eq.s32.totalorder %s28, 1
      %p140 = por %p138, %p139
      %p142 = scmp.ne.s32.totalorder %s127, %s141
      %p143 = scmp.eq.s32.totalorder %s28, 0
      %p144 = por %p142, %p143
      %s146 = sadd.s32 %s145, 1
      %p149 = scmp.eq.s32.totalorder %s22, 1
      %p150 = scmp.ne.s32.totalorder %s145, %s147
      %p151 = scmp.eq.s32.totalorder %s22, 0
      %p152 = por %p150, %p151
      %p153 = scmp.ne.s32.totalorder %s145, %s147
      %p154 = scmp.eq.s32.totalorder %s27, 1
      %p155 = por %p153, %p154
      %p156 = scmp.ne.s32.totalorder %s147, %s148
      %p157 = scmp.eq.s32.totalorder %s27, 0
      %p158 = por %p156, %p157
      %p159 = scmp.ne.s32.totalorder %s147, %s148
      %p160 = scmp.eq.s32.totalorder %s28, 1
      %p161 = por %p159, %p160
      %p163 = scmp.ne.s32.totalorder %s148, %s162
      %p164 = scmp.eq.s32.totalorder %s28, 0
      %p165 = por %p163, %p164
      %s167 = sadd.s32 %s166, 1
      %p170 = scmp.eq.s32.totalorder %s22, 1
      %p171 = scmp.ne.s32.totalorder %s166, %s168
      %p172 = scmp.eq.s32.totalorder %s22, 0
      %p173 = por %p171, %p172
      %p174 = scmp.ne.s32.totalorder %s166, %s168
      %p175 = scmp.eq.s32.totalorder %s27, 1
      %p176 = por %p174, %p175
      %p177 = scmp.ne.s32.totalorder %s168, %s169
      %p178 = scmp.eq.s32.totalorder %s27, 0
      %p179 = por %p177, %p178
      %p180 = scmp.ne.s32.totalorder %s168, %s169
      %p181 = scmp.eq.s32.totalorder %s28, 1
      %p182 = por %p180, %p181
      %p184 = scmp.ne.s32.totalorder %s169, %s183
      %p185 = scmp.eq.s32.totalorder %s28, 0
      %p186 = por %p184, %p185
      %s188 = sadd.s32 %s187, 1
      %p191 = scmp.eq.s32.totalorder %s22, 1
      %p192 = scmp.ne.s32.totalorder %s187, %s189
      %p193 = scmp.eq.s32.totalorder %s22, 0
      %p194 = por %p192, %p193
      %p195 = scmp.ne.s32.totalorder %s187, %s189
      %p196 = scmp.eq.s32.totalorder %s27, 1
      %p197 = por %p195, %p196
      %p198 = scmp.ne.s32.totalorder %s189, %s190
      %p199 = scmp.eq.s32.totalorder %s27, 0
      %p200 = por %p198, %p199
      %p201 = scmp.ne.s32.totalorder %s189, %s190
      %p202 = scmp.eq.s32.totalorder %s28, 1
      %p203 = por %p201, %p202
      %p205 = scmp.ne.s32.totalorder %s190, %s204
      %p206 = scmp.eq.s32.totalorder %s28, 0
      %p207 = por %p205, %p206
      %s209 = sadd.s32 %s208, 1
      %p212 = scmp.eq.s32.totalorder %s22, 1
      %p213 = scmp.ne.s32.totalorder %s208, %s210
      %p214 = scmp.eq.s32.totalorder %s22, 0
      %p215 = por %p213, %p214
      %p216 = scmp.ne.s32.totalorder %s208, %s210
      %p217 = scmp.eq.s32.totalorder %s27, 1
      %p218 = por %p216, %p217
      %p219 = scmp.ne.s32.totalorder %s210, %s211
      %p220 = scmp.eq.s32.totalorder %s27, 0
      %p221 = por %p219, %p220
      %p222 = scmp.ne.s32.totalorder %s210, %s211
      %p223 = scmp.eq.s32.totalorder %s28, 1
      %p224 = por %p222, %p223
      %p226 = scmp.ne.s32.totalorder %s211, %s225
      %p227 = scmp.eq.s32.totalorder %s28, 0
      %p228 = por %p226, %p227
      %s230 = sadd.s32 %s229, 1
      %p233 = scmp.eq.s32.totalorder %s22, 1
      %p234 = scmp.ne.s32.totalorder %s229, %s231
      %p235 = scmp.eq.s32.totalorder %s22, 0
      %p236 = por %p234, %p235
      %p237 = scmp.ne.s32.totalorder %s229, %s231
      %p238 = scmp.eq.s32.totalorder %s27, 1
      %p239 = por %p237, %p238
      %p240 = scmp.ne.s32.totalorder %s231, %s232
      %p241 = scmp.eq.s32.totalorder %s27, 0
      %p242 = por %p240, %p241
      %p243 = scmp.ne.s32.totalorder %s231, %s232
      %p244 = scmp.eq.s32.totalorder %s28, 1
      %p245 = por %p243, %p244
      %p247 = scmp.ne.s32.totalorder %s232, %s246
      %p248 = scmp.eq.s32.totalorder %s28, 0
      %p249 = por %p247, %p248
      %s251 = sadd.s32 %s250, 1
      %p254 = scmp.eq.s32.totalorder %s22, 1
      %p255 = scmp.ne.s32.totalorder %s250, %s252
      %p256 = scmp.eq.s32.totalorder %s22, 0
      %p257 = por %p255, %p256
      %p258 = scmp.ne.s32.totalorder %s250, %s252
      %p259 = scmp.eq.s32.totalorder %s27, 1
      %p260 = por %p258, %p259
      %p261 = scmp.ne.s32.totalorder %s252, %s253
      %p262 = scmp.eq.s32.totalorder %s27, 0
      %p263 = por %p261, %p262
      %p264 = scmp.ne.s32.totalorder %s252, %s253
      %p265 = scmp.eq.s32.totalorder %s28, 1
      %p266 = por %p264, %p265
      %p268 = scmp.ne.s32.totalorder %s253, %s267
      %p269 = scmp.eq.s32.totalorder %s28, 0
      %p270 = por %p268, %p269
      %s272 = sadd.s32 %s271, 1
      %p275 = scmp.eq.s32.totalorder %s22, 1
      %p276 = scmp.ne.s32.totalorder %s271, %s273
      %p277 = scmp.eq.s32.totalorder %s22, 0
      %p278 = por %p276, %p277
      %p279 = scmp.ne.s32.totalorder %s271, %s273
      %p280 = scmp.eq.s32.totalorder %s27, 1
      %p281 = por %p279, %p280
      %p282 = scmp.ne.s32.totalorder %s273, %s274
      %p283 = scmp.eq.s32.totalorder %s27, 0
      %p284 = por %p282, %p283
      %p285 = scmp.ne.s32.totalorder %s273, %s274
      %p286 = scmp.eq.s32.totalorder %s28, 1
      %p287 = por %p285, %p286
      %p289 = scmp.ne.s32.totalorder %s274, %s288
      %p290 = scmp.eq.s32.totalorder %s28, 0
      %p291 = por %p289, %p290
      %s292 = ssub.s32 %s22, %s29
      %p293 = scmp.eq.s32.totalorder %s292, 0
      %s295 = sadd.s32 %s294, 1
      %s296 = scalar_select %p293, %s294, %s295
      %p299 = pneg %p293
      %p300 = scmp.eq.s32.totalorder %s22, 1
      %p301 = por %p299, %p300
      %p302 = scmp.ne.s32.totalorder %s294, %s297
      %p303 = scmp.eq.s32.totalorder %s22, 0
      %p304 = por %p302, %p303
      %p305 = scmp.ne.s32.totalorder %s294, %s297
      %p306 = scmp.eq.s32.totalorder %s27, 1
      %p307 = por %p305, %p306
      %p308 = scmp.ne.s32.totalorder %s297, %s298
      %p309 = scmp.eq.s32.totalorder %s27, 0
      %p310 = por %p308, %p309
      %p311 = scmp.ne.s32.totalorder %s297, %s298
      %p312 = scmp.eq.s32.totalorder %s28, 1
      %p313 = por %p311, %p312
      %p315 = scmp.ne.s32.totalorder %s298, %s314
      %p316 = scmp.eq.s32.totalorder %s28, 0
      %p317 = por %p315, %p316
      %p318 = scmp.le.s32.totalorder 1, %s22
      %p319 = scmp.lt.s32.totalorder %s22, 3
      %p320 = pnand %p318, %p319
      %p321 = pneg %p320
      // Predicated region
      $region9: #{tpu_custom_call.1} parent=5 // pred_check
        _
      $region10: #{tpu_custom_call.1} parent=5 // pred_check_branch
        %323 = sbr.rel (%p320) target = $region12
      $region11: #{tpu_custom_call.1} parent=5 // pred_region
        %s324 = ssub.s32 %s22, 1
        // Predicated region
        $region13: #{tpu_custom_call.1} parent=11 // pred_check
          %p325 = pneg %p95
        $region14: #{tpu_custom_call.1} parent=11 // pred_check_branch
          %327 = sbr.rel (%p325) target = $region16
        $region15: #{tpu_custom_call.1} parent=11 // pred_region
          _
        $region16: #{tpu_custom_call.1} parent=11 // pred_fallthru
          _
        // Predicated region
        $region17: #{tpu_custom_call.1} parent=11 // pred_check
          %p328 = pneg %p116
        $region18: #{tpu_custom_call.1} parent=11 // pred_check_branch
          %330 = sbr.rel (%p328) target = $region20
        $region19: #{tpu_custom_call.1} parent=11 // pred_region
          %s332 = ssub.s32 64, 64
          %333 = vsyncadd [#allocation3], %s332
          %s335 = sshll.u32 [#allocation2], 4
          %s336 = int_to_ptr.vmem [resolvable:$true] %s335
          %338 = dma.hbm_to_vmem [thread:$0]  %s3, 64, %s336, [#allocation3]
        $region20: #{tpu_custom_call.1} parent=11 // pred_fallthru
          _
        // Predicated region
        $region21: #{tpu_custom_call.1} parent=11 // pred_check
          %p339 = pneg %p137
        $region22: #{tpu_custom_call.1} parent=11 // pred_check_branch
          %341 = sbr.rel (%p339) target = $region24
        $region23: #{tpu_custom_call.1} parent=11 // pred_region
          _
        $region24: #{tpu_custom_call.1} parent=11 // pred_fallthru
          _
        // Predicated region
        $region25: #{tpu_custom_call.1} parent=11 // pred_check
          %p342 = pneg %p158
        $region26: #{tpu_custom_call.1} parent=11 // pred_check_branch
          %344 = sbr.rel (%p342) target = $region28
        $region27: #{tpu_custom_call.1} parent=11 // pred_region
          _
        $region28: #{tpu_custom_call.1} parent=11 // pred_fallthru
          _
        // Predicated region
        $region29: #{tpu_custom_call.1} parent=11 // pred_check
          %p345 = pneg %p179
        $region30: #{tpu_custom_call.1} parent=11 // pred_check_branch
          %347 = sbr.rel (%p345) target = $region32
        $region31: #{tpu_custom_call.1} parent=11 // pred_region
          _
        $region32: #{tpu_custom_call.1} parent=11 // pred_fallthru
          _
        // Predicated region
        $region33: #{tpu_custom_call.1} parent=11 // pred_check
          %p348 = pneg %p200
        $region34: #{tpu_custom_call.1} parent=11 // pred_check_branch
          %350 = sbr.rel (%p348) target = $region36
        $region35: #{tpu_custom_call.1} parent=11 // pred_region
          _
        $region36: #{tpu_custom_call.1} parent=11 // pred_fallthru
          _
        // Predicated region
        $region37: #{tpu_custom_call.1} parent=11 // pred_check
          %p351 = pneg %p221
        $region38: #{tpu_custom_call.1} parent=11 // pred_check_branch
          %353 = sbr.rel (%p351) target = $region40
        $region39: #{tpu_custom_call.1} parent=11 // pred_region
          _
        $region40: #{tpu_custom_call.1} parent=11 // pred_fallthru
          _
        // Predicated region
        $region41: #{tpu_custom_call.1} parent=11 // pred_check
          %p354 = pneg %p242
        $region42: #{tpu_custom_call.1} parent=11 // pred_check_branch
          %356 = sbr.rel (%p354) target = $region44
        $region43: #{tpu_custom_call.1} parent=11 // pred_region
          _
        $region44: #{tpu_custom_call.1} parent=11 // pred_fallthru
          _
        // Predicated region
        $region45: #{tpu_custom_call.1} parent=11 // pred_check
          %p357 = pneg %p263
        $region46: #{tpu_custom_call.1} parent=11 // pred_check_branch
          %359 = sbr.rel (%p357) target = $region48
        $region47: #{tpu_custom_call.1} parent=11 // pred_region
          _
        $region48: #{tpu_custom_call.1} parent=11 // pred_fallthru
          _
        // Predicated region
        $region49: #{tpu_custom_call.1} parent=11 // pred_check
          %p360 = pneg %p284
        $region50: #{tpu_custom_call.1} parent=11 // pred_check_branch
          %362 = sbr.rel (%p360) target = $region52
        $region51: #{tpu_custom_call.1} parent=11 // pred_region
          _
        $region52: #{tpu_custom_call.1} parent=11 // pred_fallthru
          _
      $region12: #{tpu_custom_call.1} parent=5 // pred_fallthru
        _
      %p363 = scmp.lt.s32.totalorder %s22, 2
      // Predicated region
      $region53: #{tpu_custom_call.1} parent=5 // pred_check
        %p364 = pneg %p363
      $region54: #{tpu_custom_call.1} parent=5 // pred_check_branch
        %366 = sbr.rel (%p364) target = $region56
      $region55: #{tpu_custom_call.1} parent=5 // pred_region
        // Predicated region
        $region57: #{tpu_custom_call.1} parent=55 // pred_check
          %p367 = pneg %p42
        $region58: #{tpu_custom_call.1} parent=55 // pred_check_branch
          %369 = sbr.rel (%p367) target = $region60
        $region59: #{tpu_custom_call.1} parent=55 // pred_region
          %p370 = scmp.lt.s32.totalorder %s22, 1
          %s371 = scalar_select %p370, %s22, 1
          %s372 = smul.addr %s371, 2
          %s373 = smul.addr %s372, 4
          %s374 = scalar_lea.vmem %s0, %s373
        $region60: #{tpu_custom_call.1} parent=55 // pred_fallthru
          _
        // Predicated region
        $region61: #{tpu_custom_call.1} parent=55 // pred_check
          %p375 = pneg %p68
        $region62: #{tpu_custom_call.1} parent=55 // pred_check_branch
          %377 = sbr.rel (%p375) target = $region64
        $region63: #{tpu_custom_call.1} parent=55 // pred_region
          %p378 = scmp.lt.s32.totalorder %s22, 1
          %s379 = scalar_select %p378, %s22, 1
          %s380 = smul.addr %s379, 2
          %s381 = smul.addr %s380, 4
          %s382 = scalar_lea.vmem %s1, %s381
        $region64: #{tpu_custom_call.1} parent=55 // pred_fallthru
          _
      $region56: #{tpu_custom_call.1} parent=5 // pred_fallthru
        _
      %p383 = scmp.le.s32.totalorder 1, %s22
      %p384 = scmp.lt.s32.totalorder %s22, 3
      %p385 = pnand %p383, %p384
      %p386 = pneg %p385
      // Predicated region
      $region65: #{tpu_custom_call.1} parent=5 // pred_check
        _
      $region66: #{tpu_custom_call.1} parent=5 // pred_check_branch
        %388 = sbr.rel (%p385) target = $region68
      $region67: #{tpu_custom_call.1} parent=5 // pred_region
        %s389 = ssub.s32 %s22, 1
        // Predicated region
        $region69: #{tpu_custom_call.1} parent=67 // pred_check
          %p390 = pneg %p116
        $region70: #{tpu_custom_call.1} parent=67 // pred_check_branch
          %392 = sbr.rel (%p390) target = $region72
        $region71: #{tpu_custom_call.1} parent=67 // pred_region
          %393 = dma.done [#allocation3], 64
        $region72: #{tpu_custom_call.1} parent=67 // pred_fallthru
          _
        %p394 = scmp.lt.s32.totalorder %s27, 1
        %s395 = scalar_select %p394, %s27, 1
        %s396 = smul.addr %s395, 2
        %s397 = smul.addr %s396, 4
        %s398 = scalar_lea.vmem %s0, %s397
        %p399 = pneg %p48
        %p400 = pneg %p45
        %p401 = scmp.lt.s32.totalorder %s27, 1
        %s402 = scalar_select %p401, %s27, 1
        %s403 = smul.addr %s402, 2
        %s404 = smul.addr %s403, 4
        %s405 = scalar_lea.vmem %s1, %s404
        %p406 = pneg %p74
        %p407 = pneg %p71
        %p408 = pneg %p95
        %p409 = pneg %p92
        %p410 = pneg %p116
        %p411 = pneg %p113
        %p412 = pneg %p137
        %p413 = pneg %p134
        %p414 = pneg %p158
        %p415 = pneg %p155
        %p416 = pneg %p179
        %p417 = pneg %p176
        %p418 = pneg %p200
        %p419 = pneg %p197
        %p420 = pneg %p221
        %p421 = pneg %p218
        %p422 = pneg %p242
        %p423 = pneg %p239
        %p424 = pneg %p263
        %p425 = pneg %p260
        %p426 = pneg %p284
        %p427 = pneg %p281
        %p428 = pneg %p310
        %p429 = pneg %p307
        %s430 = sand.u32 %s297, 1
        %s431 = scalar_lea.sflag [#allocation4], %s430
        %s432 = sand.u32 %s297, 1
        %s433 = smul.addr %s432, 16
        %s434 = scalar_lea.vmem [#allocation5], %s433
        %p435 = scmp.lt.s32.totalorder %s27, 1
        %s436 = scalar_select %p435, %s27, 1
        %s437 = smul.addr %s436, 2
        %s438 = smul.addr %s437, 4
        %s439 = scalar_lea.vmem %s0, %s438
        %p440 = scmp.lt.s32.totalorder %s27, 1
        %s441 = scalar_select %p440, %s27, 1
        %s442 = smul.addr %s441, 2
        %s443 = smul.addr %s442, 4
        %s444 = scalar_lea.vmem %s1, %s443
        %v445 = vld [vmem:[%s2] sm:$0xff]
        %v446 = vld [vmem:[%s2 + $0x8] sm:$0xff]
        %v447 = vld [vmem:[#allocation2] sm:$0xf]
        %v448 = vld [vmem:[%s4] sm:$0xff]
        %v449 = vld [vmem:[%s5] sm:$0xff]
        %v450 = vld [vmem:[%s6] sm:$0xff]
        %v451 = vld [vmem:[%s7] sm:$0xff]
        %v452 = vld [vmem:[%s8] sm:$0xff]
        %v453 = vld [vmem:[%s9] sm:$0xff]
        %v454 = vld [vmem:[%s439] sm:$0xff]
        %v455 = vld [vmem:[%s444] sm:$0xff]
        %vm456 = vcmp.gt.f32.partialorder %v455, 0.0
        %v457 = vmul.f32 %v455, 0.2
        %v458 = vsel %vm456, %v455, %v457
        %v460 = vcombine.high %v458, %v458
        %462 = vrot.lane.b32.xlu0 %v458, 17
        %v463 = vpop.permute.xlu0 %462
        %464 = vrot.lane.b32.xlu0 %v460, 17
        %v465 = vpop.permute.xlu0 %464
        %v466 = vlaneseq
        %v467 = vand.u32 %v466, 127
        %vm468 = vcmp.lt.s32.totalorder %v467, 17
        %v469 = vsel %vm468, %v463, %v465
        %v470 = vsel %vm468, %v465, %v463
        %v471 = vlaneseq
        %v472 = vshrl.u32 %v471, 7
        %v473 = vsub.s32 0, %v472
        %v474 = vrot.slane %v445, %v473
        %v475 = vlaneseq
        %v476 = vshrl.u32 %v475, 7
        %v477 = vsub.s32 0, %v476
        %v478 = vrot.slane %v446, %v477
        %v479 = vmul.f32 %v470, %v474
        %v480 = vmul.f32 %v469, %v478
        %481 = vrot.lane.b32.xlu0 %v458, 16
        %v482 = vpop.permute.xlu0 %481
        %483 = vrot.lane.b32.xlu0 %v460, 16
        %v484 = vpop.permute.xlu0 %483
        %vm485 = vcmp.lt.s32.totalorder %v467, 16
        %v486 = vsel %vm485, %v482, %v484
        %v487 = vsel %vm485, %v484, %v482
        %v488 = vlaneseq
        %v489 = vshrl.u32 %v488, 7
        %v490 = vsub.s32 1, %v489
        %v491 = vrot.slane %v445, %v490
        %v492 = vlaneseq
        %v493 = vshrl.u32 %v492, 7
        %v494 = vsub.s32 1, %v493
        %v495 = vrot.slane %v446, %v494
        %v496 = vmul.f32 %v487, %v491
        %v497 = vmul.f32 %v486, %v495
        %498 = vrot.lane.b32.xlu0 %v458, 15
        %v499 = vpop.permute.xlu0 %498
        %500 = vrot.lane.b32.xlu0 %v460, 15
        %v501 = vpop.permute.xlu0 %500
        %vm502 = vcmp.lt.s32.totalorder %v467, 15
        %v503 = vsel %vm502, %v499, %v501
        %v504 = vsel %vm502, %v501, %v499
        %v505 = vlaneseq
        %v506 = vshrl.u32 %v505, 7
        %v507 = vsub.s32 2, %v506
        %v508 = vrot.slane %v445, %v507
        %v509 = vlaneseq
        %v510 = vshrl.u32 %v509, 7
        %v511 = vsub.s32 2, %v510
        %v512 = vrot.slane %v446, %v511
        %v513 = vmul.f32 %v504, %v508
        %v514 = vmul.f32 %v503, %v512
        %515 = vrot.lane.b32.xlu0 %v458, 1
        %v516 = vpop.permute.xlu0 %515
        %517 = vrot.lane.b32.xlu0 %v460, 1
        %v518 = vpop.permute.xlu0 %517
        %vm519 = vcmp.lt.s32.totalorder %v467, 1
        %v520 = vsel %vm519, %v516, %v518
        %v521 = vsel %vm519, %v518, %v516
        %v522 = vlaneseq
        %v523 = vshrl.u32 %v522, 7
        %v524 = vsub.s32 3, %v523
        %v525 = vrot.slane %v445, %v524
        %v526 = vlaneseq
        %v527 = vshrl.u32 %v526, 7
        %v528 = vsub.s32 3, %v527
        %v529 = vrot.slane %v446, %v528
        %v530 = vmul.f32 %v521, %v525
        %v531 = vmul.f32 %v520, %v529
        %532 = vrot.lane.b32.xlu0 %v458, 127
        %v533 = vpop.permute.xlu0 %532
        %534 = vrot.lane.b32.xlu0 %v460, 127
        %v535 = vpop.permute.xlu0 %534
        %vm536 = vcmp.lt.s32.totalorder %v467, 127
        %v537 = vsel %vm536, %v533, %v535
        %v538 = vsel %vm536, %v535, %v533
        %v539 = vlaneseq
        %v540 = vshrl.u32 %v539, 7
        %v541 = vsub.s32 4, %v540
        %v542 = vrot.slane %v445, %v541
        %v543 = vlaneseq
        %v544 = vshrl.u32 %v543, 7
        %v545 = vsub.s32 4, %v544
        %v546 = vrot.slane %v446, %v545
        %v547 = vmul.f32 %v537, %v542
        %v548 = vmul.f32 %v538, %v546
        %549 = vrot.lane.b32.xlu0 %v458, 113
        %v550 = vpop.permute.xlu0 %549
        %551 = vrot.lane.b32.xlu0 %v460, 113
        %v552 = vpop.permute.xlu0 %551
        %vm553 = vcmp.lt.s32.totalorder %v467, 113
        %v554 = vsel %vm553, %v550, %v552
        %v555 = vsel %vm553, %v552, %v550
        %v556 = vlaneseq
        %v557 = vshrl.u32 %v556, 7
        %v558 = vsub.s32 5, %v557
        %v559 = vrot.slane %v445, %v558
        %v560 = vlaneseq
        %v561 = vshrl.u32 %v560, 7
        %v562 = vsub.s32 5, %v561
        %v563 = vrot.slane %v446, %v562
        %v564 = vmul.f32 %v554, %v559
        %v565 = vmul.f32 %v555, %v563
        %566 = vrot.lane.b32.xlu0 %v458, 112
        %v567 = vpop.permute.xlu0 %566
        %568 = vrot.lane.b32.xlu0 %v460, 112
        %v569 = vpop.permute.xlu0 %568
        %vm570 = vcmp.lt.s32.totalorder %v467, 112
        %v571 = vsel %vm570, %v567, %v569
        %v572 = vsel %vm570, %v569, %v567
        %v573 = vlaneseq
        %v574 = vshrl.u32 %v573, 7
        %v575 = vsub.s32 6, %v574
        %v576 = vrot.slane %v445, %v575
        %v577 = vlaneseq
        %v578 = vshrl.u32 %v577, 7
        %v579 = vsub.s32 6, %v578
        %v580 = vrot.slane %v446, %v579
        %v581 = vmul.f32 %v571, %v576
        %v582 = vmul.f32 %v572, %v580
        %583 = vrot.lane.b32.xlu0 %v458, 111
        %v584 = vpop.permute.xlu0 %583
        %585 = vrot.lane.b32.xlu0 %v460, 111
        %v586 = vpop.permute.xlu0 %585
        %vm587 = vcmp.lt.s32.totalorder %v467, 111
        %v588 = vsel %vm587, %v584, %v586
        %v589 = vsel %vm587, %v586, %v584
        %v590 = vlaneseq
        %v591 = vshrl.u32 %v590, 7
        %v592 = vsub.s32 7, %v591
        %v593 = vrot.slane %v445, %v592
        %v594 = vlaneseq
        %v595 = vshrl.u32 %v594, 7
        %v596 = vsub.s32 7, %v595
        %v597 = vrot.slane %v446, %v596
        %v598 = vmul.f32 %v588, %v593
        %v599 = vmul.f32 %v589, %v597
        %v602 = vrot.slane %v496, 4
        %v603 = vrot.slane %v497, 4
        %v608 = vrot.slane %v530, 4
        %v609 = vrot.slane %v531, 4
        %v614 = vrot.slane %v547, 4
        %v615 = vrot.slane %v548, 4
        %v620 = vrot.slane %v581, 4
        %v621 = vrot.slane %v582, 4
        %vm624 = vcmask 1043456
        %v625 = vsel %vm624, %v479, %v602
        %v626 = vsel %vm624, %v480, %v603
        %v627 = vsel %vm624, %v513, %v608
        %v628 = vsel %vm624, %v514, %v609
        %v629 = vsel %vm624, %v458, %v614
        %v630 = vsel %vm624, %v460, %v615
        %v631 = vsel %vm624, %v564, %v620
        %v632 = vsel %vm624, %v565, %v621
        %v634 = vcombine.high %v454, %v454
        %636 = vrot.lane.b32.xlu0 %v454, 17
        %v637 = vpop.permute.xlu0 %636
        %638 = vrot.lane.b32.xlu0 %v634, 17
        %v639 = vpop.permute.xlu0 %638
        %v640 = vsel %vm468, %v637, %v639
        %v641 = vsel %vm468, %v639, %v637
        %v642 = vmul.f32 %v641, %v474
        %v643 = vmul.f32 %v640, %v478
        %644 = vrot.lane.b32.xlu0 %v454, 16
        %v645 = vpop.permute.xlu0 %644
        %646 = vrot.lane.b32.xlu0 %v634, 16
        %v647 = vpop.permute.xlu0 %646
        %v648 = vsel %vm485, %v645, %v647
        %v649 = vsel %vm485, %v647, %v645
        %v650 = vmul.f32 %v649, %v491
        %v651 = vmul.f32 %v648, %v495
        %652 = vrot.lane.b32.xlu0 %v454, 15
        %v653 = vpop.permute.xlu0 %652
        %654 = vrot.lane.b32.xlu0 %v634, 15
        %v655 = vpop.permute.xlu0 %654
        %v656 = vsel %vm502, %v653, %v655
        %v657 = vsel %vm502, %v655, %v653
        %v658 = vmul.f32 %v657, %v508
        %v659 = vmul.f32 %v656, %v512
        %660 = vrot.lane.b32.xlu0 %v454, 1
        %v661 = vpop.permute.xlu0 %660
        %662 = vrot.lane.b32.xlu0 %v634, 1
        %v663 = vpop.permute.xlu0 %662
        %v664 = vsel %vm519, %v661, %v663
        %v665 = vsel %vm519, %v663, %v661
        %v666 = vmul.f32 %v665, %v525
        %v667 = vmul.f32 %v664, %v529
        %668 = vrot.lane.b32.xlu0 %v454, 127
        %v669 = vpop.permute.xlu0 %668
        %670 = vrot.lane.b32.xlu0 %v634, 127
        %v671 = vpop.permute.xlu0 %670
        %v672 = vsel %vm536, %v669, %v671
        %v673 = vsel %vm536, %v671, %v669
        %v674 = vmul.f32 %v672, %v542
        %v675 = vmul.f32 %v673, %v546
        %676 = vrot.lane.b32.xlu0 %v454, 113
        %v677 = vpop.permute.xlu0 %676
        %678 = vrot.lane.b32.xlu0 %v634, 113
        %v679 = vpop.permute.xlu0 %678
        %v680 = vsel %vm553, %v677, %v679
        %v681 = vsel %vm553, %v679, %v677
        %v682 = vmul.f32 %v680, %v559
        %v683 = vmul.f32 %v681, %v563
        %684 = vrot.lane.b32.xlu0 %v454, 112
        %v685 = vpop.permute.xlu0 %684
        %686 = vrot.lane.b32.xlu0 %v634, 112
        %v687 = vpop.permute.xlu0 %686
        %v688 = vsel %vm570, %v685, %v687
        %v689 = vsel %vm570, %v687, %v685
        %v690 = vmul.f32 %v688, %v576
        %v691 = vmul.f32 %v689, %v580
        %692 = vrot.lane.b32.xlu0 %v454, 111
        %v693 = vpop.permute.xlu0 %692
        %694 = vrot.lane.b32.xlu0 %v634, 111
        %v695 = vpop.permute.xlu0 %694
        %v696 = vsel %vm587, %v693, %v695
        %v697 = vsel %vm587, %v695, %v693
        %v698 = vmul.f32 %v696, %v593
        %v699 = vmul.f32 %v697, %v597
        %v702 = vrot.slane %v650, 4
        %v703 = vrot.slane %v651, 4
        %v708 = vrot.slane %v666, 4
        %v709 = vrot.slane %v667, 4
        %v714 = vrot.slane %v674, 4
        %v715 = vrot.slane %v675, 4
        %v720 = vrot.slane %v690, 4
        %v721 = vrot.slane %v691, 4
        %v724 = vsel %vm624, %v642, %v702
        %v725 = vsel %vm624, %v643, %v703
        %v726 = vsel %vm624, %v658, %v708
        %v727 = vsel %vm624, %v659, %v709
        %v728 = vsel %vm624, %v454, %v714
        %v729 = vsel %vm624, %v634, %v715
        %v730 = vsel %vm624, %v682, %v720
        %v731 = vsel %vm624, %v683, %v721
        %733 = vset.pattern.permute.xlu0 0
        %734 = vperm.xlu0 %733, %v449
        %v735 = vpop.permute.xlu0 %734
        %vm737 = vcmask 293888
        %v739 = vsel %vm737, %v448, 0
        %v742 = vsel %vm624, %v698, 0
        %v745 = vsel %vm624, %v699, 0
        %747 = vmatprep.subr.mxu0 %v725
        %748 = vmatpush1.msra.mxu0 %v724
        %749 = vmatprep.subr.mxu0 %v727
        %750 = vmatpush1.msra.mxu0 %v726
        %751 = vmatprep.subr.mxu0 %v729
        %752 = vmatpush1.msra.mxu0 %v728
        %753 = vmatprep.subr.mxu0 %v731
        %754 = vmatpush1.msra.mxu0 %v730
        %755 = vmatprep.subr.mxu0 %v745
        %756 = vmatpush1.msra.mxu0 %v742
        %757 = vmatprep.subr.mxu0 0.0
        %758 = vmatpush1.msra.mxu0 0.0
        %759 = vmatprep.subr.mxu0 0.0
        %760 = vmatpush1.msra.mxu0 0.0
        %761 = vmatprep.subr.mxu0 0.0
        %762 = vmatpush1.msra.mxu0 0.0
        %763 = vmatprep.subr.mxu0 0.0
        %764 = vmatpush1.msra.mxu0 0.0
        %765 = vmatprep.subr.mxu0 0.0
        %766 = vmatpush1.msra.mxu0 0.0
        %767 = vmatprep.subr.mxu0 0.0
        %768 = vmatpush1.msra.mxu0 0.0
        %769 = vmatprep.subr.mxu0 0.0
        %770 = vmatpush1.msra.mxu0 0.0
        %771 = vmatprep.subr.mxu0 0.0
        %772 = vmatpush1.msra.mxu0 0.0
        %773 = vmatprep.subr.mxu0 0.0
        %774 = vmatpush1.msra.mxu0 0.0
        %775 = vmatprep.subr.mxu0 0.0
        %776 = vmatpush1.msra.mxu0 0.0
        %777 = vmatprep.subr.mxu0 0.0
        %778 = vmatpush1.msra.mxu0 0.0
        %779 = vmatprep.subr.mxu0 0.0
        %780 = vmatpush1.msra.mxu0 0.0
        %781 = vmatprep.subr.mxu0 0.0
        %782 = vmatpush1.msra.mxu0 0.0
        %783 = vmatprep.subr.mxu0 0.0
        %784 = vmatpush1.msra.mxu0 0.0
        %785 = vmatprep.subr.mxu0 0.0
        %786 = vmatpush1.msra.mxu0 0.0
        %787 = vmatprep.subr.mxu0 0.0
        %788 = vmatpush1.msra.mxu0 0.0
        %789 = vmatprep.subr.mxu0 0.0
        %790 = vmatpush1.msra.mxu0 0.0
        %791 = vmatprep.subr.mxu0 0.0
        %792 = vmatpush1.msra.mxu0 0.0
        %793 = vmatprep.subr.mxu0 0.0
        %794 = vmatpush1.msra.mxu0 0.0
        %795 = vmatprep.subr.mxu0 0.0
        %796 = vmatpush1.msra.mxu0 0.0
        %797 = vmatprep.subr.mxu0 0.0
        %798 = vmatpush1.msra.mxu0 0.0
        %799 = vmatprep.subr.mxu0 0.0
        %800 = vmatpush1.msra.mxu0 0.0
        %801 = vmatprep.subr.mxu0 0.0
        %802 = vmatpush1.msra.mxu0 0.0
        %803 = vmatprep.subr.mxu0 0.0
        %804 = vmatpush1.msra.mxu0 0.0
        %805 = vmatprep.subr.mxu0 0.0
        %806 = vmatpush1.msra.mxu0 0.0
        %807 = vmatprep.subr.mxu0 0.0
        %808 = vmatpush1.msra.mxu0 0.0
        %809 = vmatprep.subr.mxu0 0.0
        %810 = vmatpush1.msra.mxu0 0.0
        %811 = vmatprep.mubr.f32.mxu0 0.0
        %812 = vmatmul.mubr.f32.gmra.mrb[0].mxu0 %v739
        %v813 = vpop.f32.mrb[0].mxu0
        %v814 = vadd.f32 %v735, %v813
        %v815 = vpop.f32.mrb[0].mxu0
        %v816 = vadd.f32 %v735, %v815
        %817 = vdwg.mxu0
        %v819 = vsel %vm737, %v447, 0
        %v822 = vsel %vm624, %v598, 0
        %v825 = vsel %vm624, %v599, 0
        %827 = vmatprep.subr.mxu0 %v626
        %828 = vmatpush1.msra.mxu0 %v625
        %829 = vmatprep.subr.mxu0 %v628
        %830 = vmatpush1.msra.mxu0 %v627
        %831 = vmatprep.subr.mxu0 %v630
        %832 = vmatpush1.msra.mxu0 %v629
        %833 = vmatprep.subr.mxu0 %v632
        %834 = vmatpush1.msra.mxu0 %v631
        %835 = vmatprep.subr.mxu0 %v825
        %836 = vmatpush1.msra.mxu0 %v822
        %837 = vmatprep.subr.mxu0 0.0
        %838 = vmatpush1.msra.mxu0 0.0
        %839 = vmatprep.subr.mxu0 0.0
        %840 = vmatpush1.msra.mxu0 0.0
        %841 = vmatprep.subr.mxu0 0.0
        %842 = vmatpush1.msra.mxu0 0.0
        %843 = vmatprep.subr.mxu0 0.0
        %844 = vmatpush1.msra.mxu0 0.0
        %845 = vmatprep.subr.mxu0 0.0
        %846 = vmatpush1.msra.mxu0 0.0
        %847 = vmatprep.subr.mxu0 0.0
        %848 = vmatpush1.msra.mxu0 0.0
        %849 = vmatprep.subr.mxu0 0.0
        %850 = vmatpush1.msra.mxu0 0.0
        %851 = vmatprep.subr.mxu0 0.0
        %852 = vmatpush1.msra.mxu0 0.0
        %853 = vmatprep.subr.mxu0 0.0
        %854 = vmatpush1.msra.mxu0 0.0
        %855 = vmatprep.subr.mxu0 0.0
        %856 = vmatpush1.msra.mxu0 0.0
        %857 = vmatprep.subr.mxu0 0.0
        %858 = vmatpush1.msra.mxu0 0.0
        %859 = vmatprep.subr.mxu0 0.0
        %860 = vmatpush1.msra.mxu0 0.0
        %861 = vmatprep.subr.mxu0 0.0
        %862 = vmatpush1.msra.mxu0 0.0
        %863 = vmatprep.subr.mxu0 0.0
        %864 = vmatpush1.msra.mxu0 0.0
        %865 = vmatprep.subr.mxu0 0.0
        %866 = vmatpush1.msra.mxu0 0.0
        %867 = vmatprep.subr.mxu0 0.0
        %868 = vmatpush1.msra.mxu0 0.0
        %869 = vmatprep.subr.mxu0 0.0
        %870 = vmatpush1.msra.mxu0 0.0
        %871 = vmatprep.subr.mxu0 0.0
        %872 = vmatpush1.msra.mxu0 0.0
        %873 = vmatprep.subr.mxu0 0.0
        %874 = vmatpush1.msra.mxu0 0.0
        %875 = vmatprep.subr.mxu0 0.0
        %876 = vmatpush1.msra.mxu0 0.0
        %877 = vmatprep.subr.mxu0 0.0
        %878 = vmatpush1.msra.mxu0 0.0
        %879 = vmatprep.subr.mxu0 0.0
        %880 = vmatpush1.msra.mxu0 0.0
        %881 = vmatprep.subr.mxu0 0.0
        %882 = vmatpush1.msra.mxu0 0.0
        %883 = vmatprep.subr.mxu0 0.0
        %884 = vmatpush1.msra.mxu0 0.0
        %885 = vmatprep.subr.mxu0 0.0
        %886 = vmatpush1.msra.mxu0 0.0
        %887 = vmatprep.subr.mxu0 0.0
        %888 = vmatpush1.msra.mxu0 0.0
        %889 = vmatprep.subr.mxu0 0.0
        %890 = vmatpush1.msra.mxu0 0.0
        %891 = vmatprep.mubr.f32.mxu0 0.0
        %892 = vmatmul.mubr.f32.gmra.mrb[0].mxu0 %v819
        %v893 = vpop.f32.mrb[0].mxu0
        %v894 = vadd.f32 %v814, %v893
        %v895 = vpop.f32.mrb[0].mxu0
        %v896 = vadd.f32 %v816, %v895
        %897 = vdwg.mxu0
        %vm898 = vcmp.gt.f32.partialorder %v894, 0.0
        %vm899 = vcmp.gt.f32.partialorder %v896, 0.0
        %v900 = vmul.f32 %v894, 0.2
        %v901 = vmul.f32 %v896, 0.2
        %v902 = vsel %vm898, %v894, %v900
        %v903 = vsel %vm899, %v896, %v901
        %v904 = vsel %vm624, %v902, inf
        %v905 = vsel %vm624, %v903, inf
        %v906 = vmin.f32 %v904, %v905
        %907 = vmin.xlane.f32.xlu0 %v906
        %v908 = vpop.xlane.xlu0 %907
        %v909 = vsel %vm624, %v902, -inf
        %v910 = vsel %vm624, %v903, -inf
        %v911 = vmax.f32 %v909, %v910
        %912 = vmax.xlane.f32.xlu0 %v911
        %v913 = vpop.xlane.xlu0 %912
        %v914 = vsub.f32 %v913, %v908
        %v915 = vadd.f32 %v914, 1e-06
        %v916 = vrcp.pop %v915
        %v917 = vsub.f32 %v902, %v908
        %v918 = vsub.f32 %v903, %v908
        %v919 = vmul.f32 %v917, %v916
        %v920 = vmul.f32 %v918, %v916
        %v923 = vrot.slane %v814, 4
        %v924 = vrot.slane %v816, 4
        %v927 = vmul.f32 %v919, %v923
        %v928 = vmul.f32 %v920, %v924
        %v931 = vcombine.low %v927, %v928
        %v933 = vadd.f32 %v455, %v931
        %vm934 = vcmp.gt.f32.partialorder %v933, 0.0
        %v935 = vmul.f32 %v933, 0.2
        %v936 = vsel %vm934, %v933, %v935
        %v938 = vcombine.high %v936, %v936
        %940 = vrot.lane.b32.xlu0 %v936, 17
        %v941 = vpop.permute.xlu0 %940
        %942 = vrot.lane.b32.xlu0 %v938, 17
        %v943 = vpop.permute.xlu0 %942
        %v944 = vsel %vm468, %v941, %v943
        %v945 = vsel %vm468, %v943, %v941
        %v946 = vmul.f32 %v945, %v474
        %v947 = vmul.f32 %v944, %v478
        %948 = vrot.lane.b32.xlu0 %v936, 16
        %v949 = vpop.permute.xlu0 %948
        %950 = vrot.lane.b32.xlu0 %v938, 16
        %v951 = vpop.permute.xlu0 %950
        %v952 = vsel %vm485, %v949, %v951
        %v953 = vsel %vm485, %v951, %v949
        %v954 = vmul.f32 %v953, %v491
        %v955 = vmul.f32 %v952, %v495
        %956 = vrot.lane.b32.xlu0 %v936, 15
        %v957 = vpop.permute.xlu0 %956
        %958 = vrot.lane.b32.xlu0 %v938, 15
        %v959 = vpop.permute.xlu0 %958
        %v960 = vsel %vm502, %v957, %v959
        %v961 = vsel %vm502, %v959, %v957
        %v962 = vmul.f32 %v961, %v508
        %v963 = vmul.f32 %v960, %v512
        %964 = vrot.lane.b32.xlu0 %v936, 1
        %v965 = vpop.permute.xlu0 %964
        %966 = vrot.lane.b32.xlu0 %v938, 1
        %v967 = vpop.permute.xlu0 %966
        %v968 = vsel %vm519, %v965, %v967
        %v969 = vsel %vm519, %v967, %v965
        %v970 = vmul.f32 %v969, %v525
        %v971 = vmul.f32 %v968, %v529
        %972 = vrot.lane.b32.xlu0 %v936, 127
        %v973 = vpop.permute.xlu0 %972
        %974 = vrot.lane.b32.xlu0 %v938, 127
        %v975 = vpop.permute.xlu0 %974
        %v976 = vsel %vm536, %v973, %v975
        %v977 = vsel %vm536, %v975, %v973
        %v978 = vmul.f32 %v976, %v542
        %v979 = vmul.f32 %v977, %v546
        %980 = vrot.lane.b32.xlu0 %v936, 113
        %v981 = vpop.permute.xlu0 %980
        %982 = vrot.lane.b32.xlu0 %v938, 113
        %v983 = vpop.permute.xlu0 %982
        %v984 = vsel %vm553, %v981, %v983
        %v985 = vsel %vm553, %v983, %v981
        %v986 = vmul.f32 %v984, %v559
        %v987 = vmul.f32 %v985, %v563
        %988 = vrot.lane.b32.xlu0 %v936, 112
        %v989 = vpop.permute.xlu0 %988
        %990 = vrot.lane.b32.xlu0 %v938, 112
        %v991 = vpop.permute.xlu0 %990
        %v992 = vsel %vm570, %v989, %v991
        %v993 = vsel %vm570, %v991, %v989
        %v994 = vmul.f32 %v992, %v576
        %v995 = vmul.f32 %v993, %v580
        %996 = vrot.lane.b32.xlu0 %v936, 111
        %v997 = vpop.permute.xlu0 %996
        %998 = vrot.lane.b32.xlu0 %v938, 111
        %v999 = vpop.permute.xlu0 %998
        %v1000 = vsel %vm587, %v997, %v999
        %v1001 = vsel %vm587, %v999, %v997
        %v1002 = vmul.f32 %v1000, %v593
        %v1003 = vmul.f32 %v1001, %v597
        %v1006 = vrot.slane %v954, 4
        %v1007 = vrot.slane %v955, 4
        %v1012 = vrot.slane %v970, 4
        %v1013 = vrot.slane %v971, 4
        %v1018 = vrot.slane %v978, 4
        %v1019 = vrot.slane %v979, 4
        %v1024 = vrot.slane %v994, 4
        %v1025 = vrot.slane %v995, 4
        %v1028 = vsel %vm624, %v946, %v1006
        %v1029 = vsel %vm624, %v947, %v1007
        %v1030 = vsel %vm624, %v962, %v1012
        %v1031 = vsel %vm624, %v963, %v1013
        %v1032 = vsel %vm624, %v936, %v1018
        %v1033 = vsel %vm624, %v938, %v1019
        %v1034 = vsel %vm624, %v986, %v1024
        %v1035 = vsel %vm624, %v987, %v1025
        %1037 = vset.pattern.permute.xlu0 0
        %1038 = vperm.xlu0 %1037, %v451
        %v1039 = vpop.permute.xlu0 %1038
        %v1042 = vsel %vm737, %v450, 0
        %v1045 = vsel %vm624, %v1002, 0
        %v1048 = vsel %vm624, %v1003, 0
        %1050 = vmatprep.subr.mxu0 %v1029
        %1051 = vmatpush1.msra.mxu0 %v1028
        %1052 = vmatprep.subr.mxu0 %v1031
        %1053 = vmatpush1.msra.mxu0 %v1030
        %1054 = vmatprep.subr.mxu0 %v1033
        %1055 = vmatpush1.msra.mxu0 %v1032
        %1056 = vmatprep.subr.mxu0 %v1035
        %1057 = vmatpush1.msra.mxu0 %v1034
        %1058 = vmatprep.subr.mxu0 %v1048
        %1059 = vmatpush1.msra.mxu0 %v1045
        %1060 = vmatprep.subr.mxu0 0.0
        %1061 = vmatpush1.msra.mxu0 0.0
        %1062 = vmatprep.subr.mxu0 0.0
        %1063 = vmatpush1.msra.mxu0 0.0
        %1064 = vmatprep.subr.mxu0 0.0
        %1065 = vmatpush1.msra.mxu0 0.0
        %1066 = vmatprep.subr.mxu0 0.0
        %1067 = vmatpush1.msra.mxu0 0.0
        %1068 = vmatprep.subr.mxu0 0.0
        %1069 = vmatpush1.msra.mxu0 0.0
        %1070 = vmatprep.subr.mxu0 0.0
        %1071 = vmatpush1.msra.mxu0 0.0
        %1072 = vmatprep.subr.mxu0 0.0
        %1073 = vmatpush1.msra.mxu0 0.0
        %1074 = vmatprep.subr.mxu0 0.0
        %1075 = vmatpush1.msra.mxu0 0.0
        %1076 = vmatprep.subr.mxu0 0.0
        %1077 = vmatpush1.msra.mxu0 0.0
        %1078 = vmatprep.subr.mxu0 0.0
        %1079 = vmatpush1.msra.mxu0 0.0
        %1080 = vmatprep.subr.mxu0 0.0
        %1081 = vmatpush1.msra.mxu0 0.0
        %1082 = vmatprep.subr.mxu0 0.0
        %1083 = vmatpush1.msra.mxu0 0.0
        %1084 = vmatprep.subr.mxu0 0.0
        %1085 = vmatpush1.msra.mxu0 0.0
        %1086 = vmatprep.subr.mxu0 0.0
        %1087 = vmatpush1.msra.mxu0 0.0
        %1088 = vmatprep.subr.mxu0 0.0
        %1089 = vmatpush1.msra.mxu0 0.0
        %1090 = vmatprep.subr.mxu0 0.0
        %1091 = vmatpush1.msra.mxu0 0.0
        %1092 = vmatprep.subr.mxu0 0.0
        %1093 = vmatpush1.msra.mxu0 0.0
        %1094 = vmatprep.subr.mxu0 0.0
        %1095 = vmatpush1.msra.mxu0 0.0
        %1096 = vmatprep.subr.mxu0 0.0
        %1097 = vmatpush1.msra.mxu0 0.0
        %1098 = vmatprep.subr.mxu0 0.0
        %1099 = vmatpush1.msra.mxu0 0.0
        %1100 = vmatprep.subr.mxu0 0.0
        %1101 = vmatpush1.msra.mxu0 0.0
        %1102 = vmatprep.subr.mxu0 0.0
        %1103 = vmatpush1.msra.mxu0 0.0
        %1104 = vmatprep.subr.mxu0 0.0
        %1105 = vmatpush1.msra.mxu0 0.0
        %1106 = vmatprep.subr.mxu0 0.0
        %1107 = vmatpush1.msra.mxu0 0.0
        %1108 = vmatprep.subr.mxu0 0.0
        %1109 = vmatpush1.msra.mxu0 0.0
        %1110 = vmatprep.subr.mxu0 0.0
        %1111 = vmatpush1.msra.mxu0 0.0
        %1112 = vmatprep.subr.mxu0 0.0
        %1113 = vmatpush1.msra.mxu0 0.0
        %1114 = vmatprep.mubr.f32.mxu0 0.0
        %1115 = vmatmul.mubr.f32.gmra.mrb[0].mxu0 %v1042
        %v1116 = vpop.f32.mrb[0].mxu0
        %v1117 = vadd.f32 %v1039, %v1116
        %v1118 = vpop.f32.mrb[0].mxu0
        %v1119 = vadd.f32 %v1039, %v1118
        %1120 = vdwg.mxu0
        %vm1121 = vcmp.gt.f32.partialorder %v1117, 0.0
        %vm1122 = vcmp.gt.f32.partialorder %v1119, 0.0
        %v1123 = vmul.f32 %v1117, 0.2
        %v1124 = vmul.f32 %v1119, 0.2
        %v1125 = vsel %vm1121, %v1117, %v1123
        %v1126 = vsel %vm1122, %v1119, %v1124
        %1127 = vrot.lane.b32.xlu0 %v1125, 17
        %v1128 = vpop.permute.xlu0 %1127
        %1129 = vrot.lane.b32.xlu0 %v1126, 17
        %v1130 = vpop.permute.xlu0 %1129
        %v1131 = vsel %vm468, %v1128, %v1130
        %v1132 = vsel %vm468, %v1130, %v1128
        %v1133 = vmul.f32 %v1132, %v474
        %v1134 = vmul.f32 %v1131, %v478
        %1135 = vrot.lane.b32.xlu0 %v1125, 16
        %v1136 = vpop.permute.xlu0 %1135
        %1137 = vrot.lane.b32.xlu0 %v1126, 16
        %v1138 = vpop.permute.xlu0 %1137
        %v1139 = vsel %vm485, %v1136, %v1138
        %v1140 = vsel %vm485, %v1138, %v1136
        %v1141 = vmul.f32 %v1140, %v491
        %v1142 = vmul.f32 %v1139, %v495
        %1143 = vrot.lane.b32.xlu0 %v1125, 15
        %v1144 = vpop.permute.xlu0 %1143
        %1145 = vrot.lane.b32.xlu0 %v1126, 15
        %v1146 = vpop.permute.xlu0 %1145
        %v1147 = vsel %vm502, %v1144, %v1146
        %v1148 = vsel %vm502, %v1146, %v1144
        %v1149 = vmul.f32 %v1148, %v508
        %v1150 = vmul.f32 %v1147, %v512
        %1151 = vrot.lane.b32.xlu0 %v1125, 1
        %v1152 = vpop.permute.xlu0 %1151
        %1153 = vrot.lane.b32.xlu0 %v1126, 1
        %v1154 = vpop.permute.xlu0 %1153
        %v1155 = vsel %vm519, %v1152, %v1154
        %v1156 = vsel %vm519, %v1154, %v1152
        %v1157 = vmul.f32 %v1156, %v525
        %v1158 = vmul.f32 %v1155, %v529
        %1159 = vrot.lane.b32.xlu0 %v1125, 127
        %v1160 = vpop.permute.xlu0 %1159
        %1161 = vrot.lane.b32.xlu0 %v1126, 127
        %v1162 = vpop.permute.xlu0 %1161
        %v1163 = vsel %vm536, %v1160, %v1162
        %v1164 = vsel %vm536, %v1162, %v1160
        %v1165 = vmul.f32 %v1163, %v542
        %v1166 = vmul.f32 %v1164, %v546
        %1167 = vrot.lane.b32.xlu0 %v1125, 113
        %v1168 = vpop.permute.xlu0 %1167
        %1169 = vrot.lane.b32.xlu0 %v1126, 113
        %v1170 = vpop.permute.xlu0 %1169
        %v1171 = vsel %vm553, %v1168, %v1170
        %v1172 = vsel %vm553, %v1170, %v1168
        %v1173 = vmul.f32 %v1171, %v559
        %v1174 = vmul.f32 %v1172, %v563
        %1175 = vrot.lane.b32.xlu0 %v1125, 112
        %v1176 = vpop.permute.xlu0 %1175
        %1177 = vrot.lane.b32.xlu0 %v1126, 112
        %v1178 = vpop.permute.xlu0 %1177
        %v1179 = vsel %vm570, %v1176, %v1178
        %v1180 = vsel %vm570, %v1178, %v1176
        %v1181 = vmul.f32 %v1179, %v576
        %v1182 = vmul.f32 %v1180, %v580
        %1183 = vrot.lane.b32.xlu0 %v1125, 111
        %v1184 = vpop.permute.xlu0 %1183
        %1185 = vrot.lane.b32.xlu0 %v1126, 111
        %v1186 = vpop.permute.xlu0 %1185
        %v1187 = vsel %vm587, %v1184, %v1186
        %v1188 = vsel %vm587, %v1186, %v1184
        %v1189 = vmul.f32 %v1187, %v593
        %v1190 = vmul.f32 %v1188, %v597
        %1192 = vset.pattern.permute.xlu0 0
        %1193 = vperm.xlu0 %1192, %v453
        %v1194 = vpop.permute.xlu0 %1193
        %vm1196 = vcmask 588800
        %v1198 = vsel %vm1196, %v452, 0
        %1200 = vmatprep.subr.mxu0 %v1134
        %1201 = vmatpush1.msra.mxu0 %v1133
        %1202 = vmatprep.subr.mxu0 %v1142
        %1203 = vmatpush1.msra.mxu0 %v1141
        %1204 = vmatprep.subr.mxu0 %v1150
        %1205 = vmatpush1.msra.mxu0 %v1149
        %1206 = vmatprep.subr.mxu0 %v1158
        %1207 = vmatpush1.msra.mxu0 %v1157
        %1208 = vmatprep.subr.mxu0 %v1126
        %1209 = vmatpush1.msra.mxu0 %v1125
        %1210 = vmatprep.subr.mxu0 %v1166
        %1211 = vmatpush1.msra.mxu0 %v1165
        %1212 = vmatprep.subr.mxu0 %v1174
        %1213 = vmatpush1.msra.mxu0 %v1173
        %1214 = vmatprep.subr.mxu0 %v1182
        %1215 = vmatpush1.msra.mxu0 %v1181
        %1216 = vmatprep.subr.mxu0 %v1190
        %1217 = vmatpush1.msra.mxu0 %v1189
        %1218 = vmatprep.subr.mxu0 0.0
        %1219 = vmatpush1.msra.mxu0 0.0
        %1220 = vmatprep.subr.mxu0 0.0
        %1221 = vmatpush1.msra.mxu0 0.0
        %1222 = vmatprep.subr.mxu0 0.0
        %1223 = vmatpush1.msra.mxu0 0.0
        %1224 = vmatprep.subr.mxu0 0.0
        %1225 = vmatpush1.msra.mxu0 0.0
        %1226 = vmatprep.subr.mxu0 0.0
        %1227 = vmatpush1.msra.mxu0 0.0
        %1228 = vmatprep.subr.mxu0 0.0
        %1229 = vmatpush1.msra.mxu0 0.0
        %1230 = vmatprep.subr.mxu0 0.0
        %1231 = vmatpush1.msra.mxu0 0.0
        %1232 = vmatprep.subr.mxu0 0.0
        %1233 = vmatpush1.msra.mxu0 0.0
        %1234 = vmatprep.subr.mxu0 0.0
        %1235 = vmatpush1.msra.mxu0 0.0
        %1236 = vmatprep.subr.mxu0 0.0
        %1237 = vmatpush1.msra.mxu0 0.0
        %1238 = vmatprep.subr.mxu0 0.0
        %1239 = vmatpush1.msra.mxu0 0.0
        %1240 = vmatprep.subr.mxu0 0.0
        %1241 = vmatpush1.msra.mxu0 0.0
        %1242 = vmatprep.subr.mxu0 0.0
        %1243 = vmatpush1.msra.mxu0 0.0
        %1244 = vmatprep.subr.mxu0 0.0
        %1245 = vmatpush1.msra.mxu0 0.0
        %1246 = vmatprep.subr.mxu0 0.0
        %1247 = vmatpush1.msra.mxu0 0.0
        %1248 = vmatprep.subr.mxu0 0.0
        %1249 = vmatpush1.msra.mxu0 0.0
        %1250 = vmatprep.subr.mxu0 0.0
        %1251 = vmatpush1.msra.mxu0 0.0
        %1252 = vmatprep.subr.mxu0 0.0
        %1253 = vmatpush1.msra.mxu0 0.0
        %1254 = vmatprep.subr.mxu0 0.0
        %1255 = vmatpush1.msra.mxu0 0.0
        %1256 = vmatprep.subr.mxu0 0.0
        %1257 = vmatpush1.msra.mxu0 0.0
        %1258 = vmatprep.subr.mxu0 0.0
        %1259 = vmatpush1.msra.mxu0 0.0
        %1260 = vmatprep.subr.mxu0 0.0
        %1261 = vmatpush1.msra.mxu0 0.0
        %1262 = vmatprep.subr.mxu0 0.0
        %1263 = vmatpush1.msra.mxu0 0.0
        %1264 = vmatprep.mubr.f32.mxu0 0.0
        %1265 = vmatmul.mubr.f32.gmra.mrb[0].mxu0 %v1198
        %v1266 = vpop.f32.mrb[0].mxu0
        %v1267 = vadd.f32 %v1194, %v1266
        %v1268 = vpop.f32.mrb[0].mxu0
        %v1269 = vadd.f32 %v1194, %v1268
        %1270 = vdwg.mxu0
        %v1271 = vld [vmem:[%s10] sm:$0xff]
        %v1272 = vld [vmem:[%s11] sm:$0xff]
        %1274 = vset.pattern.permute.xlu0 0
        %1275 = vperm.xlu0 %1274, %v1272
        %v1276 = vpop.permute.xlu0 %1275
        %v1279 = vcombine.high %v455, %v455
        %vm1280 = vcmask 31744
        %v1282 = vsel %vm1280, %v1271, 0
        %v1284 = vsel %vm624, %v455, 0
        %v1286 = vsel %vm624, %v1279, 0
        %1288 = vmatprep.subr.mxu0 %v1286
        %1289 = vmatpush1.msra.mxu0 %v1284
        %1290 = vmatprep.subr.mxu0 0.0
        %1291 = vmatpush1.msra.mxu0 0.0
        %1292 = vmatprep.subr.mxu0 0.0
        %1293 = vmatpush1.msra.mxu0 0.0
        %1294 = vmatprep.subr.mxu0 0.0
        %1295 = vmatpush1.msra.mxu0 0.0
        %1296 = vmatprep.subr.mxu0 0.0
        %1297 = vmatpush1.msra.mxu0 0.0
        %1298 = vmatprep.subr.mxu0 0.0
        %1299 = vmatpush1.msra.mxu0 0.0
        %1300 = vmatprep.subr.mxu0 0.0
        %1301 = vmatpush1.msra.mxu0 0.0
        %1302 = vmatprep.subr.mxu0 0.0
        %1303 = vmatpush1.msra.mxu0 0.0
        %1304 = vmatprep.subr.mxu0 0.0
        %1305 = vmatpush1.msra.mxu0 0.0
        %1306 = vmatprep.subr.mxu0 0.0
        %1307 = vmatpush1.msra.mxu0 0.0
        %1308 = vmatprep.subr.mxu0 0.0
        %1309 = vmatpush1.msra.mxu0 0.0
        %1310 = vmatprep.subr.mxu0 0.0
        %1311 = vmatpush1.msra.mxu0 0.0
        %1312 = vmatprep.subr.mxu0 0.0
        %1313 = vmatpush1.msra.mxu0 0.0
        %1314 = vmatprep.subr.mxu0 0.0
        %1315 = vmatpush1.msra.mxu0 0.0
        %1316 = vmatprep.subr.mxu0 0.0
        %1317 = vmatpush1.msra.mxu0 0.0
        %1318 = vmatprep.subr.mxu0 0.0
        %1319 = vmatpush1.msra.mxu0 0.0
        %1320 = vmatprep.subr.mxu0 0.0
        %1321 = vmatpush1.msra.mxu0 0.0
        %1322 = vmatprep.subr.mxu0 0.0
        %1323 = vmatpush1.msra.mxu0 0.0
        %1324 = vmatprep.subr.mxu0 0.0
        %1325 = vmatpush1.msra.mxu0 0.0
        %1326 = vmatprep.subr.mxu0 0.0
        %1327 = vmatpush1.msra.mxu0 0.0
        %1328 = vmatprep.subr.mxu0 0.0
        %1329 = vmatpush1.msra.mxu0 0.0
        %1330 = vmatprep.subr.mxu0 0.0
        %1331 = vmatpush1.msra.mxu0 0.0
        %1332 = vmatprep.subr.mxu0 0.0
        %1333 = vmatpush1.msra.mxu0 0.0
        %1334 = vmatprep.subr.mxu0 0.0
        %1335 = vmatpush1.msra.mxu0 0.0
        %1336 = vmatprep.subr.mxu0 0.0
        %1337 = vmatpush1.msra.mxu0 0.0
        %1338 = vmatprep.subr.mxu0 0.0
        %1339 = vmatpush1.msra.mxu0 0.0
        %1340 = vmatprep.subr.mxu0 0.0
        %1341 = vmatpush1.msra.mxu0 0.0
        %1342 = vmatprep.subr.mxu0 0.0
        %1343 = vmatpush1.msra.mxu0 0.0
        %1344 = vmatprep.subr.mxu0 0.0
        %1345 = vmatpush1.msra.mxu0 0.0
        %1346 = vmatprep.subr.mxu0 0.0
        %1347 = vmatpush1.msra.mxu0 0.0
        %1348 = vmatprep.subr.mxu0 0.0
        %1349 = vmatpush1.msra.mxu0 0.0
        %1350 = vmatprep.subr.mxu0 0.0
        %1351 = vmatpush1.msra.mxu0 0.0
        %1352 = vmatprep.mubr.f32.mxu0 0.0
        %1353 = vmatmul.mubr.f32.gmra.mrb[0].mxu0 %v1282
        %v1354 = vpop.f32.mrb[0].mxu0
        %v1355 = vadd.f32 %v1276, %v1354
        %v1356 = vpop.f32.mrb[0].mxu0
        %v1357 = vadd.f32 %v1276, %v1356
        %1358 = vdwg.mxu0
        %v1359 = vadd.f32 %v1355, %v1267
        %v1360 = vadd.f32 %v1357, %v1269
        %1361 = vst [vmem:[%s434] sm:$0xff] %v1359
        %1362 = vst [vmem:[%s434 + $0x8] sm:$0xff] %v1360
        %s1363 = sand.u32 %s297, 1
        %s1364 = scalar_lea.sflag [#allocation4], %s1363
        %s1365 = sand.u32 %s297, 1
        %s1366 = smul.addr %s1365, 16
        %s1367 = scalar_lea.vmem [#allocation5], %s1366
        // Predicated region
        $region73: #{tpu_custom_call.1} parent=67 // pred_check
          %p1368 = pneg %p307
        $region74: #{tpu_custom_call.1} parent=67 // pred_check_branch
          %1370 = sbr.rel (%p1368) target = $region76
        $region75: #{tpu_custom_call.1} parent=67 // pred_region
          %s1372 = ssub.s32 256, 256
          %1373 = vsyncadd %s1364, %s1372
          %s1374 = smul.addr %s27, 2
          %s1375 = smul.addr %s1374, 128
          %s1376 = scalar_lea.hbm %s12, %s1375
          %s1378 = sshll.u32 %s1367, 4
          %s1379 = int_to_ptr.vmem [resolvable:$true] %s1378
          %1381 = dma.vmem_to_hbm [thread:$0]  %s1379, 256, %s1376, %s1364
        $region76: #{tpu_custom_call.1} parent=67 // pred_fallthru
          _
      $region68: #{tpu_custom_call.1} parent=5 // pred_fallthru
        _
      %p1382 = scmp.le.s32.totalorder 2, %s22
      // Predicated region
      $region77: #{tpu_custom_call.1} parent=5 // pred_check
        %p1383 = pneg %p1382
      $region78: #{tpu_custom_call.1} parent=5 // pred_check_branch
        %1385 = sbr.rel (%p1383) target = $region80
      $region79: #{tpu_custom_call.1} parent=5 // pred_region
        %s1386 = ssub.s32 %s22, 2
        // Predicated region
        $region81: #{tpu_custom_call.1} parent=79 // pred_check
          %p1387 = pneg %p313
        $region82: #{tpu_custom_call.1} parent=79 // pred_check_branch
          %1389 = sbr.rel (%p1387) target = $region84
        $region83: #{tpu_custom_call.1} parent=79 // pred_region
          %s1390 = sand.u32 %s298, 1
          %s1391 = scalar_lea.sflag [#allocation4], %s1390
          %s1392 = sand.u32 %s298, 1
          %s1393 = smul.addr %s1392, 16
          %s1394 = scalar_lea.vmem [#allocation5], %s1393
          %1395 = dma.done %s1391, 256
        $region84: #{tpu_custom_call.1} parent=79 // pred_fallthru
          _
      $region80: #{tpu_custom_call.1} parent=5 // pred_fallthru
        _
    $region6: #{tpu_custom_call.1} parent=1 // loop_footer
      %s26 = sadd.s32 1, %s22
    $region7: #{tpu_custom_call.1} parent=1 // loop_footer_branch
      %21 = sbr.rel target = $region3
    $region8: #{tpu_custom_call.1} parent=1 // loop_exit
      _
    %1396 = vsyncpa [#allocation3], 1
    %s1397 = scalar_lea.sflag [#allocation3], 1
    %1398 = vsyncpa %s1397, 1
    %1399 = vsyncpa [#allocation4], 1
    %s1400 = scalar_lea.sflag [#allocation4], 1
    %1401 = vsyncpa %s1400, 1

</llo_original>
